<compile_context>
chip_gen: v6e
topology: v6e:2x2x1
jax: 0.10.0
libtpu: 0.0.40
codegen_flags: <defaults>
</compile_context>

<pallas_src>
import jax
import jax.numpy as jnp
import numpy as np
from jax import lax
from jax.experimental import pallas as pl
from jax.experimental.pallas import tpu as pltpu

# ---- config (matches a small SentimentRNN instance) ----
VOCAB = 100
EMBED = 32
HIDDEN = 32
N_LAYERS = 2
OUT_SIZE = 1
BATCH = 2
SEQ = 8

assert N_LAYERS == 2, "wavefront kernel is specialized for the 2-layer config"
assert OUT_SIZE == 1, "FC head uses a lane reduction (output_size == 1)"
# nn.LSTM layer-1 input dim == hidden_dim; the stacked w_ih init array relies on EMBED == HIDDEN.
assert EMBED == HIDDEN


def sentiment_lstm_kernel(tok_ref, hin_ref, cin_ref, tab0_ref, whh0_ref,
                          w1cat_ref, b1_ref, fcw_ref, fcb_ref,
                          out_ref, hn_ref, cn_ref):
    """tok_ref: (BATCH, SEQ) int32 token ids                                   [SMEM]
       hin/cin: (N_LAYERS, BATCH, HIDDEN) initial hidden/cell state            [VMEM]
       tab0:    (VOCAB, 1, 4H)  embedding @ W_ih0^T + b_ih0 + b_hh0, gates [i,f,o,g]
       whh0:    (H, 4H)   layer-0 recurrent weights (transposed, gates [i,f,o,g])
       w1cat:   (2H, 4H)  layer-1 [W_ih1 ; W_hh1] (transposed, gates [i,f,o,g])
       b1:      (1, 4H)   layer-1 fused bias
       fcw:     (OUT_SIZE, H) fc weight;  fcb: (1, OUT_SIZE)
       out:     (BATCH, OUT_SIZE);  hn/cn: (N_LAYERS, BATCH, HIDDEN)"""
    H, B = HIDDEN, BATCH
    f32 = jnp.float32

    # Hoist weight loads out of the unrolled recurrence.
    whh0 = whh0_ref[...]            # (H, 4H)
    w1cat = w1cat_ref[...]          # (2H, 4H)
    b1 = b1_ref[...]                # (1, 4H)

    h0, h1 = hin_ref[0], hin_ref[1]   # (B, H) per-layer hidden state
    c0, c1 = cin_ref[0], cin_ref[1]   # (B, H) per-layer cell state

    def pre0(s):
        # Token gather doubles as layer-0's (hoisted) input projection + bias:
        # tab0[v] = embedding[v] @ W_ih0^T + b0, so no x@W_ih matmul on the step path.
        rows = [tab0_ref[tok_ref[b, s]] for b in range(B)]    # B x (1, 4H) dynamic-row loads
        return jnp.concatenate(rows, axis=0)                  # (B, 4H)

    def cell(gates, c_prev):
        # gate columns pre-permuted to [i | f | o | g]: one contiguous sigmoid, one tanh.
        sg = jax.nn.sigmoid(gates[:, :3 * H])
        g = jnp.tanh(gates[:, 3 * H:])
        c_new = sg[:, H:2 * H] * c_prev + sg[:, :H] * g
        h_new = sg[:, 2 * H:3 * H] * jnp.tanh(c_new)
        return h_new, c_new

    # ---- stage 0 (wavefront prologue): layer-0 step 0 only ----
    g0 = pre0(0) + jnp.dot(h0, whh0, preferred_element_type=f32)
    h0, c0 = cell(g0, c0)
    c_st = jnp.concatenate([c0, c1], axis=0)                  # (2B, H) stacked [layer0; layer1]

    # ---- middle stages s = 1..SEQ-1: layer-0 step s  ||  layer-1 step s-1 (independent) ----
    for s in range(1, SEQ):
        g0 = pre0(s) + jnp.dot(h0, whh0, preferred_element_type=f32)
        g1 = jnp.dot(jnp.concatenate([h0, h1], axis=-1), w1cat,
                     preferred_element_type=f32) + b1
        gates = jnp.concatenate([g0, g1], axis=0)             # (2B, 4H): one sigmoid/tanh push
        h_st, c_st = cell(gates, c_st)
        h0 = h_st[:B]
        h1 = h_st[B:]

    # ---- wavefront epilogue: layer-1 step SEQ-1 only ----
    g1 = jnp.dot(jnp.concatenate([h0, h1], axis=-1), w1cat,
                 preferred_element_type=f32) + b1
    h1, c1 = cell(g1, c_st[B:])

    hn_ref[0] = h0
    hn_ref[1] = h1
    cn_ref[0] = c_st[:B]
    cn_ref[1] = c1

    # lstm_out[:, -1, :] == final hidden state of the top layer.
    # TODO(synk): inter-layer LSTM dropout(0.5) and nn.Dropout(0.3) are identity in eval mode.
    # FC head: OUT_SIZE == 1 -> VPU multiply + lane reduction (avoids an N=1 MXU matmul).
    logits = jnp.sum(h1 * fcw_ref[...], axis=-1, keepdims=True) + fcb_ref[...]
    out_ref[...] = jax.nn.sigmoid(logits)


def prepare_params(params):
    """One-time weight prep (outside the per-call hot path):
       * permute gate columns from PyTorch's [i,f,g,o] to the kernel's [i,f,o,g]
       * transpose weights to (in, 4H) and fuse the two biases
       * fold embedding @ W_ih0^T + b0 into one token->gates table (in-kernel gather ==
         layer-0 input projection)
       * concatenate layer-1's input/recurrent weights so its step is a single matmul."""
    H = HIDDEN
    perm = np.concatenate([np.arange(0 * H, 1 * H),    # i
                           np.arange(1 * H, 2 * H),    # f
                           np.arange(3 * H, 4 * H),    # o
                           np.arange(2 * H, 3 * H)])   # g
    perm = jnp.asarray(perm)
    b0 = (params["b_ih"][0] + params["b_hh"][0])[perm]                          # (4H,)
    b1 = (params["b_ih"][1] + params["b_hh"][1])[perm]                          # (4H,)
    tab0 = (params["embedding"] @ params["w_ih"][0].T)[:, perm] + b0[None, :]   # (V, 4H)
    return {
        "tab0": tab0[:, None, :],                                               # (V, 1, 4H)
        "whh0": params["w_hh"][0].T[:, perm],                                   # (H, 4H)
        "w1cat": jnp.concatenate([params["w_ih"][1].T,
                                  params["w_hh"][1].T], axis=0)[:, perm],       # (2H, 4H)
        "b1": b1[None, :],                                                      # (1, 4H)
        "fcw": params["fc_w"],                                                  # (1, H)
        "fcb": params["fc_b"][None, :],                                         # (1, 1)
    }


@jax.jit
def sentiment_forward(x_tokens, h0, c0, prep):
    smem = pl.BlockSpec(memory_space=pltpu.MemorySpace.SMEM)
    vmem = pl.BlockSpec(memory_space=pltpu.MemorySpace.VMEM)
    out, hn, cn = pl.pallas_call(
        sentiment_lstm_kernel,
        out_shape=(jax.ShapeDtypeStruct((BATCH, OUT_SIZE), jnp.float32),
                   jax.ShapeDtypeStruct((N_LAYERS, BATCH, HIDDEN), jnp.float32),
                   jax.ShapeDtypeStruct((N_LAYERS, BATCH, HIDDEN), jnp.float32)),
        in_specs=[smem] + [vmem] * 8,
        out_specs=(vmem, vmem, vmem),
    )(x_tokens, h0, c0, prep["tab0"], prep["whh0"], prep["w1cat"],
      prep["b1"], prep["fcw"], prep["fcb"])
    return out, (hn, cn)


def reference_forward(x_tokens, h0, c0, params):
    """Pure-JAX reference reproducing the PyTorch forward (eval mode), raw param layout."""
    H = HIDDEN
    emb = params["embedding"][x_tokens]                # (B, S, E)
    layer_in = jnp.transpose(emb, (1, 0, 2))           # (S, B, E)
    hn, cn = [], []
    for layer in range(N_LAYERS):
        w_ih, w_hh = params["w_ih"][layer], params["w_hh"][layer]
        b = params["b_ih"][layer] + params["b_hh"][layer]

        def step(carry, x_t):
            h, c = carry
            gates = x_t @ w_ih.T + h @ w_hh.T + b
            i = jax.nn.sigmoid(gates[:, 0 * H:1 * H])
            f = jax.nn.sigmoid(gates[:, 1 * H:2 * H])
            g = jnp.tanh(gates[:, 2 * H:3 * H])
            o = jax.nn.sigmoid(gates[:, 3 * H:4 * H])
            c_new = f * c + i * g
            h_new = o * jnp.tanh(c_new)
            return (h_new, c_new), h_new

        (h_f, c_f), outs = lax.scan(step, (h0[layer], c0[layer]), layer_in)
        hn.append(h_f)
        cn.append(c_f)
        layer_in = outs
    h_last = layer_in[-1]                              # (B, H) last timestep, top layer
    out = jax.nn.sigmoid(h_last @ params["fc_w"].T + params["fc_b"])
    return out, (jnp.stack(hn), jnp.stack(cn))


def init_params(key):
    ks = jax.random.split(key, 6)
    scale = 1.0 / np.sqrt(HIDDEN)
    return {
        "embedding": 0.1 * jax.random.normal(ks[0], (VOCAB, EMBED), jnp.float32),
        "w_ih": jax.random.uniform(ks[1], (N_LAYERS, 4 * HIDDEN, EMBED),
                                   jnp.float32, -scale, scale),
        "w_hh": jax.random.uniform(ks[2], (N_LAYERS, 4 * HIDDEN, HIDDEN),
                                   jnp.float32, -scale, scale),
        "b_ih": jax.random.uniform(ks[3], (N_LAYERS, 4 * HIDDEN),
                                   jnp.float32, -scale, scale),
        "b_hh": jax.random.uniform(ks[4], (N_LAYERS, 4 * HIDDEN),
                                   jnp.float32, -scale, scale),
        "fc_w": jax.random.uniform(ks[5], (OUT_SIZE, HIDDEN),
                                   jnp.float32, -scale, scale),
        "fc_b": jnp.zeros((OUT_SIZE,), jnp.float32),
    }


if __name__ == "__main__":
    key = jax.random.PRNGKey(0)
    k_tok, k_par = jax.random.split(key)
    params = init_params(k_par)
    prep = jax.block_until_ready(prepare_params(params))   # one-time weight prep

    x_tokens = jax.random.randint(k_tok, (BATCH, SEQ), 0, VOCAB, dtype=jnp.int32)
    # init_hidden(batch_size): zeros of shape (n_layers, batch, hidden)
    h0 = jnp.zeros((N_LAYERS, BATCH, HIDDEN), jnp.float32)
    c0 = jnp.zeros((N_LAYERS, BATCH, HIDDEN), jnp.float32)

    out, (hn, cn) = sentiment_forward(x_tokens, h0, c0, prep)
    jax.block_until_ready((out, hn, cn))

    ref_out, (ref_hn, ref_cn) = reference_forward(x_tokens, h0, c0, params)
    np.testing.assert_allclose(np.asarray(out), np.asarray(ref_out), rtol=1e-5, atol=1e-5)
    np.testing.assert_allclose(np.asarray(hn), np.asarray(ref_hn), rtol=1e-5, atol=1e-5)
    np.testing.assert_allclose(np.asarray(cn), np.asarray(ref_cn), rtol=1e-5, atol=1e-5)
    print("KERNEL_OK")
</pallas_src>

<mosaic_0001>
module attributes {stable_mosaic.version = 11 : i64} {
  func.func @sentiment_lstm_kernel(%arg0: memref<2x8xi32, #tpu.memory_space<smem>>, %arg1: memref<2x2x32xf32, #tpu.memory_space<vmem>>, %arg2: memref<2x2x32xf32, #tpu.memory_space<vmem>>, %arg3: memref<100x1x128xf32, #tpu.memory_space<vmem>>, %arg4: memref<32x128xf32, #tpu.memory_space<vmem>>, %arg5: memref<64x128xf32, #tpu.memory_space<vmem>>, %arg6: memref<1x128xf32, #tpu.memory_space<vmem>>, %arg7: memref<1x32xf32, #tpu.memory_space<vmem>>, %arg8: memref<1x1xf32, #tpu.memory_space<vmem>>, %arg9: memref<2x1xf32, #tpu.memory_space<vmem>>, %arg10: memref<2x2x32xf32, #tpu.memory_space<vmem>>, %arg11: memref<2x2x32xf32, #tpu.memory_space<vmem>>) attributes {dimension_semantics = [], scalar_prefetch = 0 : i64, scratch_operands = 0 : i64, tpu.core_type = #tpu.core_type<tc>} {
    %c0 = arith.constant 0 : index
    %c0_0 = arith.constant 0 : index
    %0 = vector.load %arg4[%c0, %c0_0] : memref<32x128xf32, #tpu.memory_space<vmem>>, vector<32x128xf32>
    %c0_1 = arith.constant 0 : index
    %c0_2 = arith.constant 0 : index
    %1 = vector.load %arg5[%c0_1, %c0_2] : memref<64x128xf32, #tpu.memory_space<vmem>>, vector<64x128xf32>
    %c0_3 = arith.constant 0 : index
    %c0_4 = arith.constant 0 : index
    %2 = vector.load %arg6[%c0_3, %c0_4] : memref<1x128xf32, #tpu.memory_space<vmem>>, vector<1x128xf32>
    %c0_5 = arith.constant 0 : index
    %c0_6 = arith.constant 0 : index
    %c0_7 = arith.constant 0 : index
    %3 = vector.load %arg1[%c0_5, %c0_6, %c0_7] : memref<2x2x32xf32, #tpu.memory_space<vmem>>, vector<1x2x32xf32>
    %4 = vector.shape_cast %3 : vector<1x2x32xf32> to vector<2x32xf32>
    %c1 = arith.constant 1 : index
    %c0_8 = arith.constant 0 : index
    %c0_9 = arith.constant 0 : index
    %5 = vector.load %arg1[%c1, %c0_8, %c0_9] : memref<2x2x32xf32, #tpu.memory_space<vmem>>, vector<1x2x32xf32>
    %6 = vector.shape_cast %5 : vector<1x2x32xf32> to vector<2x32xf32>
    %c0_10 = arith.constant 0 : index
    %c0_11 = arith.constant 0 : index
    %c0_12 = arith.constant 0 : index
    %7 = vector.load %arg2[%c0_10, %c0_11, %c0_12] : memref<2x2x32xf32, #tpu.memory_space<vmem>>, vector<1x2x32xf32>
    %8 = vector.shape_cast %7 : vector<1x2x32xf32> to vector<2x32xf32>
    %c1_13 = arith.constant 1 : index
    %c0_14 = arith.constant 0 : index
    %c0_15 = arith.constant 0 : index
    %9 = vector.load %arg2[%c1_13, %c0_14, %c0_15] : memref<2x2x32xf32, #tpu.memory_space<vmem>>, vector<1x2x32xf32>
    %10 = vector.shape_cast %9 : vector<1x2x32xf32> to vector<2x32xf32>
    %c0_16 = arith.constant 0 : index
    %c0_17 = arith.constant 0 : index
    %11 = memref.load %arg0[%c0_16, %c0_17] : memref<2x8xi32, #tpu.memory_space<smem>>
    %12 = arith.index_cast %11 : i32 to index
    %c0_18 = arith.constant 0 : index
    %c0_19 = arith.constant 0 : index
    %13 = vector.load %arg3[%12, %c0_18, %c0_19] : memref<100x1x128xf32, #tpu.memory_space<vmem>>, vector<1x1x128xf32>
    %14 = vector.shape_cast %13 : vector<1x1x128xf32> to vector<1x128xf32>
    %c1_20 = arith.constant 1 : index
    %c0_21 = arith.constant 0 : index
    %15 = memref.load %arg0[%c1_20, %c0_21] : memref<2x8xi32, #tpu.memory_space<smem>>
    %16 = arith.index_cast %15 : i32 to index
    %c0_22 = arith.constant 0 : index
    %c0_23 = arith.constant 0 : index
    %17 = vector.load %arg3[%16, %c0_22, %c0_23] : memref<100x1x128xf32, #tpu.memory_space<vmem>>, vector<1x1x128xf32>
    %18 = vector.shape_cast %17 : vector<1x1x128xf32> to vector<1x128xf32>
    %19 = tpu.concatenate %14, %18 in 0 : vector<1x128xf32>, vector<1x128xf32> -> vector<2x128xf32>
    %cst = arith.constant dense<0.000000e+00> : vector<2x128xf32>
    %20 = tpu.matmul %4, %0, %cst {dimension_numbers = #tpu.dot_dimension_numbers<[1], [0], [0], [1], [0, 0, 1, 1], [], []>} : vector<2x32xf32>, vector<32x128xf32>, vector<2x128xf32> -> vector<2x128xf32>
    %21 = arith.addf %19, %20 : vector<2x128xf32>
    %22 = vector.extract_strided_slice %21 {offsets = [0, 0], sizes = [2, 96], strides = [1, 1]} : vector<2x128xf32> to vector<2x96xf32>
    %23 = arith.negf %22 : vector<2x96xf32>
    %24 = math.exp %23 : vector<2x96xf32>
    %cst_24 = arith.constant 1.000000e+00 : f32
    %25 = vector.broadcast %cst_24 : f32 to vector<2x96xf32>
    %26 = arith.addf %25, %24 : vector<2x96xf32>
    %27 = arith.divf %25, %26 : vector<2x96xf32>
    %28 = vector.extract_strided_slice %21 {offsets = [0, 96], sizes = [2, 32], strides = [1, 1]} : vector<2x128xf32> to vector<2x32xf32>
    %29 = math.tanh %28 : vector<2x32xf32>
    %30 = vector.extract_strided_slice %27 {offsets = [0, 32], sizes = [2, 32], strides = [1, 1]} : vector<2x96xf32> to vector<2x32xf32>
    %31 = arith.mulf %30, %8 : vector<2x32xf32>
    %32 = vector.extract_strided_slice %27 {offsets = [0, 0], sizes = [2, 32], strides = [1, 1]} : vector<2x96xf32> to vector<2x32xf32>
    %33 = arith.mulf %32, %29 : vector<2x32xf32>
    %34 = arith.addf %31, %33 : vector<2x32xf32>
    %35 = vector.extract_strided_slice %27 {offsets = [0, 64], sizes = [2, 32], strides = [1, 1]} : vector<2x96xf32> to vector<2x32xf32>
    %36 = math.tanh %34 : vector<2x32xf32>
    %37 = arith.mulf %35, %36 : vector<2x32xf32>
    %38 = tpu.concatenate %34, %10 in 0 : vector<2x32xf32>, vector<2x32xf32> -> vector<4x32xf32>
    %c0_25 = arith.constant 0 : index
    %c1_26 = arith.constant 1 : index
    %39 = memref.load %arg0[%c0_25, %c1_26] : memref<2x8xi32, #tpu.memory_space<smem>>
    %40 = arith.index_cast %39 : i32 to index
    %c0_27 = arith.constant 0 : index
    %c0_28 = arith.constant 0 : index
    %41 = vector.load %arg3[%40, %c0_27, %c0_28] : memref<100x1x128xf32, #tpu.memory_space<vmem>>, vector<1x1x128xf32>
    %42 = vector.shape_cast %41 : vector<1x1x128xf32> to vector<1x128xf32>
    %c1_29 = arith.constant 1 : index
    %c1_30 = arith.constant 1 : index
    %43 = memref.load %arg0[%c1_29, %c1_30] : memref<2x8xi32, #tpu.memory_space<smem>>
    %44 = arith.index_cast %43 : i32 to index
    %c0_31 = arith.constant 0 : index
    %c0_32 = arith.constant 0 : index
    %45 = vector.load %arg3[%44, %c0_31, %c0_32] : memref<100x1x128xf32, #tpu.memory_space<vmem>>, vector<1x1x128xf32>
    %46 = vector.shape_cast %45 : vector<1x1x128xf32> to vector<1x128xf32>
    %47 = tpu.concatenate %42, %46 in 0 : vector<1x128xf32>, vector<1x128xf32> -> vector<2x128xf32>
    %cst_33 = arith.constant dense<0.000000e+00> : vector<2x128xf32>
    %48 = tpu.matmul %37, %0, %cst_33 {dimension_numbers = #tpu.dot_dimension_numbers<[1], [0], [0], [1], [0, 0, 1, 1], [], []>} : vector<2x32xf32>, vector<32x128xf32>, vector<2x128xf32> -> vector<2x128xf32>
    %49 = arith.addf %47, %48 : vector<2x128xf32>
    %50 = tpu.concatenate %37, %6 in 1 : vector<2x32xf32>, vector<2x32xf32> -> vector<2x64xf32>
    %cst_34 = arith.constant dense<0.000000e+00> : vector<2x128xf32>
    %51 = tpu.matmul %50, %1, %cst_34 {dimension_numbers = #tpu.dot_dimension_numbers<[1], [0], [0], [1], [0, 0, 1, 1], [], []>} : vector<2x64xf32>, vector<64x128xf32>, vector<2x128xf32> -> vector<2x128xf32>
    %52 = vector.broadcast %2 : vector<1x128xf32> to vector<2x128xf32>
    %53 = arith.addf %51, %52 : vector<2x128xf32>
    %54 = tpu.concatenate %49, %53 in 0 : vector<2x128xf32>, vector<2x128xf32> -> vector<4x128xf32>
    %55 = vector.extract_strided_slice %54 {offsets = [0, 0], sizes = [4, 96], strides = [1, 1]} : vector<4x128xf32> to vector<4x96xf32>
    %56 = arith.negf %55 : vector<4x96xf32>
    %57 = math.exp %56 : vector<4x96xf32>
    %cst_35 = arith.constant 1.000000e+00 : f32
    %58 = vector.broadcast %cst_35 : f32 to vector<4x96xf32>
    %59 = arith.addf %58, %57 : vector<4x96xf32>
    %60 = arith.divf %58, %59 : vector<4x96xf32>
    %61 = vector.extract_strided_slice %54 {offsets = [0, 96], sizes = [4, 32], strides = [1, 1]} : vector<4x128xf32> to vector<4x32xf32>
    %62 = math.tanh %61 : vector<4x32xf32>
    %63 = vector.extract_strided_slice %60 {offsets = [0, 32], sizes = [4, 32], strides = [1, 1]} : vector<4x96xf32> to vector<4x32xf32>
    %64 = arith.mulf %63, %38 : vector<4x32xf32>
    %65 = vector.extract_strided_slice %60 {offsets = [0, 0], sizes = [4, 32], strides = [1, 1]} : vector<4x96xf32> to vector<4x32xf32>
    %66 = arith.mulf %65, %62 : vector<4x32xf32>
    %67 = arith.addf %64, %66 : vector<4x32xf32>
    %68 = vector.extract_strided_slice %60 {offsets = [0, 64], sizes = [4, 32], strides = [1, 1]} : vector<4x96xf32> to vector<4x32xf32>
    %69 = math.tanh %67 : vector<4x32xf32>
    %70 = arith.mulf %68, %69 : vector<4x32xf32>
    %71 = vector.extract_strided_slice %70 {offsets = [0, 0], sizes = [2, 32], strides = [1, 1]} : vector<4x32xf32> to vector<2x32xf32>
    %72 = vector.extract_strided_slice %70 {offsets = [2, 0], sizes = [2, 32], strides = [1, 1]} : vector<4x32xf32> to vector<2x32xf32>
    %c0_36 = arith.constant 0 : index
    %c2 = arith.constant 2 : index
    %73 = memref.load %arg0[%c0_36, %c2] : memref<2x8xi32, #tpu.memory_space<smem>>
    %74 = arith.index_cast %73 : i32 to index
    %c0_37 = arith.constant 0 : index
    %c0_38 = arith.constant 0 : index
    %75 = vector.load %arg3[%74, %c0_37, %c0_38] : memref<100x1x128xf32, #tpu.memory_space<vmem>>, vector<1x1x128xf32>
    %76 = vector.shape_cast %75 : vector<1x1x128xf32> to vector<1x128xf32>
    %c1_39 = arith.constant 1 : index
    %c2_40 = arith.constant 2 : index
    %77 = memref.load %arg0[%c1_39, %c2_40] : memref<2x8xi32, #tpu.memory_space<smem>>
    %78 = arith.index_cast %77 : i32 to index
    %c0_41 = arith.constant 0 : index
    %c0_42 = arith.constant 0 : index
    %79 = vector.load %arg3[%78, %c0_41, %c0_42] : memref<100x1x128xf32, #tpu.memory_space<vmem>>, vector<1x1x128xf32>
    %80 = vector.shape_cast %79 : vector<1x1x128xf32> to vector<1x128xf32>
    %81 = tpu.concatenate %76, %80 in 0 : vector<1x128xf32>, vector<1x128xf32> -> vector<2x128xf32>
    %cst_43 = arith.constant dense<0.000000e+00> : vector<2x128xf32>
    %82 = tpu.matmul %71, %0, %cst_43 {dimension_numbers = #tpu.dot_dimension_numbers<[1], [0], [0], [1], [0, 0, 1, 1], [], []>} : vector<2x32xf32>, vector<32x128xf32>, vector<2x128xf32> -> vector<2x128xf32>
    %83 = arith.addf %81, %82 : vector<2x128xf32>
    %84 = tpu.concatenate %71, %72 in 1 : vector<2x32xf32>, vector<2x32xf32> -> vector<2x64xf32>
    %cst_44 = arith.constant dense<0.000000e+00> : vector<2x128xf32>
    %85 = tpu.matmul %84, %1, %cst_44 {dimension_numbers = #tpu.dot_dimension_numbers<[1], [0], [0], [1], [0, 0, 1, 1], [], []>} : vector<2x64xf32>, vector<64x128xf32>, vector<2x128xf32> -> vector<2x128xf32>
    %86 = vector.broadcast %2 : vector<1x128xf32> to vector<2x128xf32>
    %87 = arith.addf %85, %86 : vector<2x128xf32>
    %88 = tpu.concatenate %83, %87 in 0 : vector<2x128xf32>, vector<2x128xf32> -> vector<4x128xf32>
    %89 = vector.extract_strided_slice %88 {offsets = [0, 0], sizes = [4, 96], strides = [1, 1]} : vector<4x128xf32> to vector<4x96xf32>
    %90 = arith.negf %89 : vector<4x96xf32>
    %91 = math.exp %90 : vector<4x96xf32>
    %cst_45 = arith.constant 1.000000e+00 : f32
    %92 = vector.broadcast %cst_45 : f32 to vector<4x96xf32>
    %93 = arith.addf %92, %91 : vector<4x96xf32>
    %94 = arith.divf %92, %93 : vector<4x96xf32>
    %95 = vector.extract_strided_slice %88 {offsets = [0, 96], sizes = [4, 32], strides = [1, 1]} : vector<4x128xf32> to vector<4x32xf32>
    %96 = math.tanh %95 : vector<4x32xf32>
    %97 = vector.extract_strided_slice %94 {offsets = [0, 32], sizes = [4, 32], strides = [1, 1]} : vector<4x96xf32> to vector<4x32xf32>
    %98 = arith.mulf %97, %67 : vector<4x32xf32>
    %99 = vector.extract_strided_slice %94 {offsets = [0, 0], sizes = [4, 32], strides = [1, 1]} : vector<4x96xf32> to vector<4x32xf32>
    %100 = arith.mulf %99, %96 : vector<4x32xf32>
    %101 = arith.addf %98, %100 : vector<4x32xf32>
    %102 = vector.extract_strided_slice %94 {offsets = [0, 64], sizes = [4, 32], strides = [1, 1]} : vector<4x96xf32> to vector<4x32xf32>
    %103 = math.tanh %101 : vector<4x32xf32>
    %104 = arith.mulf %102, %103 : vector<4x32xf32>
    %105 = vector.extract_strided_slice %104 {offsets = [0, 0], sizes = [2, 32], strides = [1, 1]} : vector<4x32xf32> to vector<2x32xf32>
    %106 = vector.extract_strided_slice %104 {offsets = [2, 0], sizes = [2, 32], strides = [1, 1]} : vector<4x32xf32> to vector<2x32xf32>
    %c0_46 = arith.constant 0 : index
    %c3 = arith.constant 3 : index
    %107 = memref.load %arg0[%c0_46, %c3] : memref<2x8xi32, #tpu.memory_space<smem>>
    %108 = arith.index_cast %107 : i32 to index
    %c0_47 = arith.constant 0 : index
    %c0_48 = arith.constant 0 : index
    %109 = vector.load %arg3[%108, %c0_47, %c0_48] : memref<100x1x128xf32, #tpu.memory_space<vmem>>, vector<1x1x128xf32>
    %110 = vector.shape_cast %109 : vector<1x1x128xf32> to vector<1x128xf32>
    %c1_49 = arith.constant 1 : index
    %c3_50 = arith.constant 3 : index
    %111 = memref.load %arg0[%c1_49, %c3_50] : memref<2x8xi32, #tpu.memory_space<smem>>
    %112 = arith.index_cast %111 : i32 to index
    %c0_51 = arith.constant 0 : index
    %c0_52 = arith.constant 0 : index
    %113 = vector.load %arg3[%112, %c0_51, %c0_52] : memref<100x1x128xf32, #tpu.memory_space<vmem>>, vector<1x1x128xf32>
    %114 = vector.shape_cast %113 : vector<1x1x128xf32> to vector<1x128xf32>
    %115 = tpu.concatenate %110, %114 in 0 : vector<1x128xf32>, vector<1x128xf32> -> vector<2x128xf32>
    %cst_53 = arith.constant dense<0.000000e+00> : vector<2x128xf32>
    %116 = tpu.matmul %105, %0, %cst_53 {dimension_numbers = #tpu.dot_dimension_numbers<[1], [0], [0], [1], [0, 0, 1, 1], [], []>} : vector<2x32xf32>, vector<32x128xf32>, vector<2x128xf32> -> vector<2x128xf32>
    %117 = arith.addf %115, %116 : vector<2x128xf32>
    %118 = tpu.concatenate %105, %106 in 1 : vector<2x32xf32>, vector<2x32xf32> -> vector<2x64xf32>
    %cst_54 = arith.constant dense<0.000000e+00> : vector<2x128xf32>
    %119 = tpu.matmul %118, %1, %cst_54 {dimension_numbers = #tpu.dot_dimension_numbers<[1], [0], [0], [1], [0, 0, 1, 1], [], []>} : vector<2x64xf32>, vector<64x128xf32>, vector<2x128xf32> -> vector<2x128xf32>
    %120 = vector.broadcast %2 : vector<1x128xf32> to vector<2x128xf32>
    %121 = arith.addf %119, %120 : vector<2x128xf32>
    %122 = tpu.concatenate %117, %121 in 0 : vector<2x128xf32>, vector<2x128xf32> -> vector<4x128xf32>
    %123 = vector.extract_strided_slice %122 {offsets = [0, 0], sizes = [4, 96], strides = [1, 1]} : vector<4x128xf32> to vector<4x96xf32>
    %124 = arith.negf %123 : vector<4x96xf32>
    %125 = math.exp %124 : vector<4x96xf32>
    %cst_55 = arith.constant 1.000000e+00 : f32
    %126 = vector.broadcast %cst_55 : f32 to vector<4x96xf32>
    %127 = arith.addf %126, %125 : vector<4x96xf32>
    %128 = arith.divf %126, %127 : vector<4x96xf32>
    %129 = vector.extract_strided_slice %122 {offsets = [0, 96], sizes = [4, 32], strides = [1, 1]} : vector<4x128xf32> to vector<4x32xf32>
    %130 = math.tanh %129 : vector<4x32xf32>
    %131 = vector.extract_strided_slice %128 {offsets = [0, 32], sizes = [4, 32], strides = [1, 1]} : vector<4x96xf32> to vector<4x32xf32>
    %132 = arith.mulf %131, %101 : vector<4x32xf32>
    %133 = vector.extract_strided_slice %128 {offsets = [0, 0], sizes = [4, 32], strides = [1, 1]} : vector<4x96xf32> to vector<4x32xf32>
    %134 = arith.mulf %133, %130 : vector<4x32xf32>
    %135 = arith.addf %132, %134 : vector<4x32xf32>
    %136 = vector.extract_strided_slice %128 {offsets = [0, 64], sizes = [4, 32], strides = [1, 1]} : vector<4x96xf32> to vector<4x32xf32>
    %137 = math.tanh %135 : vector<4x32xf32>
    %138 = arith.mulf %136, %137 : vector<4x32xf32>
    %139 = vector.extract_strided_slice %138 {offsets = [0, 0], sizes = [2, 32], strides = [1, 1]} : vector<4x32xf32> to vector<2x32xf32>
    %140 = vector.extract_strided_slice %138 {offsets = [2, 0], sizes = [2, 32], strides = [1, 1]} : vector<4x32xf32> to vector<2x32xf32>
    %c0_56 = arith.constant 0 : index
    %c4 = arith.constant 4 : index
    %141 = memref.load %arg0[%c0_56, %c4] : memref<2x8xi32, #tpu.memory_space<smem>>
    %142 = arith.index_cast %141 : i32 to index
    %c0_57 = arith.constant 0 : index
    %c0_58 = arith.constant 0 : index
    %143 = vector.load %arg3[%142, %c0_57, %c0_58] : memref<100x1x128xf32, #tpu.memory_space<vmem>>, vector<1x1x128xf32>
    %144 = vector.shape_cast %143 : vector<1x1x128xf32> to vector<1x128xf32>
    %c1_59 = arith.constant 1 : index
    %c4_60 = arith.constant 4 : index
    %145 = memref.load %arg0[%c1_59, %c4_60] : memref<2x8xi32, #tpu.memory_space<smem>>
    %146 = arith.index_cast %145 : i32 to index
    %c0_61 = arith.constant 0 : index
    %c0_62 = arith.constant 0 : index
    %147 = vector.load %arg3[%146, %c0_61, %c0_62] : memref<100x1x128xf32, #tpu.memory_space<vmem>>, vector<1x1x128xf32>
    %148 = vector.shape_cast %147 : vector<1x1x128xf32> to vector<1x128xf32>
    %149 = tpu.concatenate %144, %148 in 0 : vector<1x128xf32>, vector<1x128xf32> -> vector<2x128xf32>
    %cst_63 = arith.constant dense<0.000000e+00> : vector<2x128xf32>
    %150 = tpu.matmul %139, %0, %cst_63 {dimension_numbers = #tpu.dot_dimension_numbers<[1], [0], [0], [1], [0, 0, 1, 1], [], []>} : vector<2x32xf32>, vector<32x128xf32>, vector<2x128xf32> -> vector<2x128xf32>
    %151 = arith.addf %149, %150 : vector<2x128xf32>
    %152 = tpu.concatenate %139, %140 in 1 : vector<2x32xf32>, vector<2x32xf32> -> vector<2x64xf32>
    %cst_64 = arith.constant dense<0.000000e+00> : vector<2x128xf32>
    %153 = tpu.matmul %152, %1, %cst_64 {dimension_numbers = #tpu.dot_dimension_numbers<[1], [0], [0], [1], [0, 0, 1, 1], [], []>} : vector<2x64xf32>, vector<64x128xf32>, vector<2x128xf32> -> vector<2x128xf32>
    %154 = vector.broadcast %2 : vector<1x128xf32> to vector<2x128xf32>
    %155 = arith.addf %153, %154 : vector<2x128xf32>
    %156 = tpu.concatenate %151, %155 in 0 : vector<2x128xf32>, vector<2x128xf32> -> vector<4x128xf32>
    %157 = vector.extract_strided_slice %156 {offsets = [0, 0], sizes = [4, 96], strides = [1, 1]} : vector<4x128xf32> to vector<4x96xf32>
    %158 = arith.negf %157 : vector<4x96xf32>
    %159 = math.exp %158 : vector<4x96xf32>
    %cst_65 = arith.constant 1.000000e+00 : f32
    %160 = vector.broadcast %cst_65 : f32 to vector<4x96xf32>
    %161 = arith.addf %160, %159 : vector<4x96xf32>
    %162 = arith.divf %160, %161 : vector<4x96xf32>
    %163 = vector.extract_strided_slice %156 {offsets = [0, 96], sizes = [4, 32], strides = [1, 1]} : vector<4x128xf32> to vector<4x32xf32>
    %164 = math.tanh %163 : vector<4x32xf32>
    %165 = vector.extract_strided_slice %162 {offsets = [0, 32], sizes = [4, 32], strides = [1, 1]} : vector<4x96xf32> to vector<4x32xf32>
    %166 = arith.mulf %165, %135 : vector<4x32xf32>
    %167 = vector.extract_strided_slice %162 {offsets = [0, 0], sizes = [4, 32], strides = [1, 1]} : vector<4x96xf32> to vector<4x32xf32>
    %168 = arith.mulf %167, %164 : vector<4x32xf32>
    %169 = arith.addf %166, %168 : vector<4x32xf32>
    %170 = vector.extract_strided_slice %162 {offsets = [0, 64], sizes = [4, 32], strides = [1, 1]} : vector<4x96xf32> to vector<4x32xf32>
    %171 = math.tanh %169 : vector<4x32xf32>
    %172 = arith.mulf %170, %171 : vector<4x32xf32>
    %173 = vector.extract_strided_slice %172 {offsets = [0, 0], sizes = [2, 32], strides = [1, 1]} : vector<4x32xf32> to vector<2x32xf32>
    %174 = vector.extract_strided_slice %172 {offsets = [2, 0], sizes = [2, 32], strides = [1, 1]} : vector<4x32xf32> to vector<2x32xf32>
    %c0_66 = arith.constant 0 : index
    %c5 = arith.constant 5 : index
    %175 = memref.load %arg0[%c0_66, %c5] : memref<2x8xi32, #tpu.memory_space<smem>>
    %176 = arith.index_cast %175 : i32 to index
    %c0_67 = arith.constant 0 : index
    %c0_68 = arith.constant 0 : index
    %177 = vector.load %arg3[%176, %c0_67, %c0_68] : memref<100x1x128xf32, #tpu.memory_space<vmem>>, vector<1x1x128xf32>
    %178 = vector.shape_cast %177 : vector<1x1x128xf32> to vector<1x128xf32>
    %c1_69 = arith.constant 1 : index
    %c5_70 = arith.constant 5 : index
    %179 = memref.load %arg0[%c1_69, %c5_70] : memref<2x8xi32, #tpu.memory_space<smem>>
    %180 = arith.index_cast %179 : i32 to index
    %c0_71 = arith.constant 0 : index
    %c0_72 = arith.constant 0 : index
    %181 = vector.load %arg3[%180, %c0_71, %c0_72] : memref<100x1x128xf32, #tpu.memory_space<vmem>>, vector<1x1x128xf32>
    %182 = vector.shape_cast %181 : vector<1x1x128xf32> to vector<1x128xf32>
    %183 = tpu.concatenate %178, %182 in 0 : vector<1x128xf32>, vector<1x128xf32> -> vector<2x128xf32>
    %cst_73 = arith.constant dense<0.000000e+00> : vector<2x128xf32>
    %184 = tpu.matmul %173, %0, %cst_73 {dimension_numbers = #tpu.dot_dimension_numbers<[1], [0], [0], [1], [0, 0, 1, 1], [], []>} : vector<2x32xf32>, vector<32x128xf32>, vector<2x128xf32> -> vector<2x128xf32>
    %185 = arith.addf %183, %184 : vector<2x128xf32>
    %186 = tpu.concatenate %173, %174 in 1 : vector<2x32xf32>, vector<2x32xf32> -> vector<2x64xf32>
    %cst_74 = arith.constant dense<0.000000e+00> : vector<2x128xf32>
    %187 = tpu.matmul %186, %1, %cst_74 {dimension_numbers = #tpu.dot_dimension_numbers<[1], [0], [0], [1], [0, 0, 1, 1], [], []>} : vector<2x64xf32>, vector<64x128xf32>, vector<2x128xf32> -> vector<2x128xf32>
    %188 = vector.broadcast %2 : vector<1x128xf32> to vector<2x128xf32>
    %189 = arith.addf %187, %188 : vector<2x128xf32>
    %190 = tpu.concatenate %185, %189 in 0 : vector<2x128xf32>, vector<2x128xf32> -> vector<4x128xf32>
    %191 = vector.extract_strided_slice %190 {offsets = [0, 0], sizes = [4, 96], strides = [1, 1]} : vector<4x128xf32> to vector<4x96xf32>
    %192 = arith.negf %191 : vector<4x96xf32>
    %193 = math.exp %192 : vector<4x96xf32>
    %cst_75 = arith.constant 1.000000e+00 : f32
    %194 = vector.broadcast %cst_75 : f32 to vector<4x96xf32>
    %195 = arith.addf %194, %193 : vector<4x96xf32>
    %196 = arith.divf %194, %195 : vector<4x96xf32>
    %197 = vector.extract_strided_slice %190 {offsets = [0, 96], sizes = [4, 32], strides = [1, 1]} : vector<4x128xf32> to vector<4x32xf32>
    %198 = math.tanh %197 : vector<4x32xf32>
    %199 = vector.extract_strided_slice %196 {offsets = [0, 32], sizes = [4, 32], strides = [1, 1]} : vector<4x96xf32> to vector<4x32xf32>
    %200 = arith.mulf %199, %169 : vector<4x32xf32>
    %201 = vector.extract_strided_slice %196 {offsets = [0, 0], sizes = [4, 32], strides = [1, 1]} : vector<4x96xf32> to vector<4x32xf32>
    %202 = arith.mulf %201, %198 : vector<4x32xf32>
    %203 = arith.addf %200, %202 : vector<4x32xf32>
    %204 = vector.extract_strided_slice %196 {offsets = [0, 64], sizes = [4, 32], strides = [1, 1]} : vector<4x96xf32> to vector<4x32xf32>
    %205 = math.tanh %203 : vector<4x32xf32>
    %206 = arith.mulf %204, %205 : vector<4x32xf32>
    %207 = vector.extract_strided_slice %206 {offsets = [0, 0], sizes = [2, 32], strides = [1, 1]} : vector<4x32xf32> to vector<2x32xf32>
    %208 = vector.extract_strided_slice %206 {offsets = [2, 0], sizes = [2, 32], strides = [1, 1]} : vector<4x32xf32> to vector<2x32xf32>
    %c0_76 = arith.constant 0 : index
    %c6 = arith.constant 6 : index
    %209 = memref.load %arg0[%c0_76, %c6] : memref<2x8xi32, #tpu.memory_space<smem>>
    %210 = arith.index_cast %209 : i32 to index
    %c0_77 = arith.constant 0 : index
    %c0_78 = arith.constant 0 : index
    %211 = vector.load %arg3[%210, %c0_77, %c0_78] : memref<100x1x128xf32, #tpu.memory_space<vmem>>, vector<1x1x128xf32>
    %212 = vector.shape_cast %211 : vector<1x1x128xf32> to vector<1x128xf32>
    %c1_79 = arith.constant 1 : index
    %c6_80 = arith.constant 6 : index
    %213 = memref.load %arg0[%c1_79, %c6_80] : memref<2x8xi32, #tpu.memory_space<smem>>
    %214 = arith.index_cast %213 : i32 to index
    %c0_81 = arith.constant 0 : index
    %c0_82 = arith.constant 0 : index
    %215 = vector.load %arg3[%214, %c0_81, %c0_82] : memref<100x1x128xf32, #tpu.memory_space<vmem>>, vector<1x1x128xf32>
    %216 = vector.shape_cast %215 : vector<1x1x128xf32> to vector<1x128xf32>
    %217 = tpu.concatenate %212, %216 in 0 : vector<1x128xf32>, vector<1x128xf32> -> vector<2x128xf32>
    %cst_83 = arith.constant dense<0.000000e+00> : vector<2x128xf32>
    %218 = tpu.matmul %207, %0, %cst_83 {dimension_numbers = #tpu.dot_dimension_numbers<[1], [0], [0], [1], [0, 0, 1, 1], [], []>} : vector<2x32xf32>, vector<32x128xf32>, vector<2x128xf32> -> vector<2x128xf32>
    %219 = arith.addf %217, %218 : vector<2x128xf32>
    %220 = tpu.concatenate %207, %208 in 1 : vector<2x32xf32>, vector<2x32xf32> -> vector<2x64xf32>
    %cst_84 = arith.constant dense<0.000000e+00> : vector<2x128xf32>
    %221 = tpu.matmul %220, %1, %cst_84 {dimension_numbers = #tpu.dot_dimension_numbers<[1], [0], [0], [1], [0, 0, 1, 1], [], []>} : vector<2x64xf32>, vector<64x128xf32>, vector<2x128xf32> -> vector<2x128xf32>
    %222 = vector.broadcast %2 : vector<1x128xf32> to vector<2x128xf32>
    %223 = arith.addf %221, %222 : vector<2x128xf32>
    %224 = tpu.concatenate %219, %223 in 0 : vector<2x128xf32>, vector<2x128xf32> -> vector<4x128xf32>
    %225 = vector.extract_strided_slice %224 {offsets = [0, 0], sizes = [4, 96], strides = [1, 1]} : vector<4x128xf32> to vector<4x96xf32>
    %226 = arith.negf %225 : vector<4x96xf32>
    %227 = math.exp %226 : vector<4x96xf32>
    %cst_85 = arith.constant 1.000000e+00 : f32
    %228 = vector.broadcast %cst_85 : f32 to vector<4x96xf32>
    %229 = arith.addf %228, %227 : vector<4x96xf32>
    %230 = arith.divf %228, %229 : vector<4x96xf32>
    %231 = vector.extract_strided_slice %224 {offsets = [0, 96], sizes = [4, 32], strides = [1, 1]} : vector<4x128xf32> to vector<4x32xf32>
    %232 = math.tanh %231 : vector<4x32xf32>
    %233 = vector.extract_strided_slice %230 {offsets = [0, 32], sizes = [4, 32], strides = [1, 1]} : vector<4x96xf32> to vector<4x32xf32>
    %234 = arith.mulf %233, %203 : vector<4x32xf32>
    %235 = vector.extract_strided_slice %230 {offsets = [0, 0], sizes = [4, 32], strides = [1, 1]} : vector<4x96xf32> to vector<4x32xf32>
    %236 = arith.mulf %235, %232 : vector<4x32xf32>
    %237 = arith.addf %234, %236 : vector<4x32xf32>
    %238 = vector.extract_strided_slice %230 {offsets = [0, 64], sizes = [4, 32], strides = [1, 1]} : vector<4x96xf32> to vector<4x32xf32>
    %239 = math.tanh %237 : vector<4x32xf32>
    %240 = arith.mulf %238, %239 : vector<4x32xf32>
    %241 = vector.extract_strided_slice %240 {offsets = [0, 0], sizes = [2, 32], strides = [1, 1]} : vector<4x32xf32> to vector<2x32xf32>
    %242 = vector.extract_strided_slice %240 {offsets = [2, 0], sizes = [2, 32], strides = [1, 1]} : vector<4x32xf32> to vector<2x32xf32>
    %c0_86 = arith.constant 0 : index
    %c7 = arith.constant 7 : index
    %243 = memref.load %arg0[%c0_86, %c7] : memref<2x8xi32, #tpu.memory_space<smem>>
    %244 = arith.index_cast %243 : i32 to index
    %c0_87 = arith.constant 0 : index
    %c0_88 = arith.constant 0 : index
    %245 = vector.load %arg3[%244, %c0_87, %c0_88] : memref<100x1x128xf32, #tpu.memory_space<vmem>>, vector<1x1x128xf32>
    %246 = vector.shape_cast %245 : vector<1x1x128xf32> to vector<1x128xf32>
    %c1_89 = arith.constant 1 : index
    %c7_90 = arith.constant 7 : index
    %247 = memref.load %arg0[%c1_89, %c7_90] : memref<2x8xi32, #tpu.memory_space<smem>>
    %248 = arith.index_cast %247 : i32 to index
    %c0_91 = arith.constant 0 : index
    %c0_92 = arith.constant 0 : index
    %249 = vector.load %arg3[%248, %c0_91, %c0_92] : memref<100x1x128xf32, #tpu.memory_space<vmem>>, vector<1x1x128xf32>
    %250 = vector.shape_cast %249 : vector<1x1x128xf32> to vector<1x128xf32>
    %251 = tpu.concatenate %246, %250 in 0 : vector<1x128xf32>, vector<1x128xf32> -> vector<2x128xf32>
    %cst_93 = arith.constant dense<0.000000e+00> : vector<2x128xf32>
    %252 = tpu.matmul %241, %0, %cst_93 {dimension_numbers = #tpu.dot_dimension_numbers<[1], [0], [0], [1], [0, 0, 1, 1], [], []>} : vector<2x32xf32>, vector<32x128xf32>, vector<2x128xf32> -> vector<2x128xf32>
    %253 = arith.addf %251, %252 : vector<2x128xf32>
    %254 = tpu.concatenate %241, %242 in 1 : vector<2x32xf32>, vector<2x32xf32> -> vector<2x64xf32>
    %cst_94 = arith.constant dense<0.000000e+00> : vector<2x128xf32>
    %255 = tpu.matmul %254, %1, %cst_94 {dimension_numbers = #tpu.dot_dimension_numbers<[1], [0], [0], [1], [0, 0, 1, 1], [], []>} : vector<2x64xf32>, vector<64x128xf32>, vector<2x128xf32> -> vector<2x128xf32>
    %256 = vector.broadcast %2 : vector<1x128xf32> to vector<2x128xf32>
    %257 = arith.addf %255, %256 : vector<2x128xf32>
    %258 = tpu.concatenate %253, %257 in 0 : vector<2x128xf32>, vector<2x128xf32> -> vector<4x128xf32>
    %259 = vector.extract_strided_slice %258 {offsets = [0, 0], sizes = [4, 96], strides = [1, 1]} : vector<4x128xf32> to vector<4x96xf32>
    %260 = arith.negf %259 : vector<4x96xf32>
    %261 = math.exp %260 : vector<4x96xf32>
    %cst_95 = arith.constant 1.000000e+00 : f32
    %262 = vector.broadcast %cst_95 : f32 to vector<4x96xf32>
    %263 = arith.addf %262, %261 : vector<4x96xf32>
    %264 = arith.divf %262, %263 : vector<4x96xf32>
    %265 = vector.extract_strided_slice %258 {offsets = [0, 96], sizes = [4, 32], strides = [1, 1]} : vector<4x128xf32> to vector<4x32xf32>
    %266 = math.tanh %265 : vector<4x32xf32>
    %267 = vector.extract_strided_slice %264 {offsets = [0, 32], sizes = [4, 32], strides = [1, 1]} : vector<4x96xf32> to vector<4x32xf32>
    %268 = arith.mulf %267, %237 : vector<4x32xf32>
    %269 = vector.extract_strided_slice %264 {offsets = [0, 0], sizes = [4, 32], strides = [1, 1]} : vector<4x96xf32> to vector<4x32xf32>
    %270 = arith.mulf %269, %266 : vector<4x32xf32>
    %271 = arith.addf %268, %270 : vector<4x32xf32>
    %272 = vector.extract_strided_slice %264 {offsets = [0, 64], sizes = [4, 32], strides = [1, 1]} : vector<4x96xf32> to vector<4x32xf32>
    %273 = math.tanh %271 : vector<4x32xf32>
    %274 = arith.mulf %272, %273 : vector<4x32xf32>
    %275 = vector.extract_strided_slice %274 {offsets = [0, 0], sizes = [2, 32], strides = [1, 1]} : vector<4x32xf32> to vector<2x32xf32>
    %276 = vector.extract_strided_slice %274 {offsets = [2, 0], sizes = [2, 32], strides = [1, 1]} : vector<4x32xf32> to vector<2x32xf32>
    %277 = tpu.concatenate %275, %276 in 1 : vector<2x32xf32>, vector<2x32xf32> -> vector<2x64xf32>
    %cst_96 = arith.constant dense<0.000000e+00> : vector<2x128xf32>
    %278 = tpu.matmul %277, %1, %cst_96 {dimension_numbers = #tpu.dot_dimension_numbers<[1], [0], [0], [1], [0, 0, 1, 1], [], []>} : vector<2x64xf32>, vector<64x128xf32>, vector<2x128xf32> -> vector<2x128xf32>
    %279 = vector.broadcast %2 : vector<1x128xf32> to vector<2x128xf32>
    %280 = arith.addf %278, %279 : vector<2x128xf32>
    %281 = vector.extract_strided_slice %271 {offsets = [2, 0], sizes = [2, 32], strides = [1, 1]} : vector<4x32xf32> to vector<2x32xf32>
    %282 = vector.extract_strided_slice %280 {offsets = [0, 0], sizes = [2, 96], strides = [1, 1]} : vector<2x128xf32> to vector<2x96xf32>
    %283 = arith.negf %282 : vector<2x96xf32>
    %284 = math.exp %283 : vector<2x96xf32>
    %cst_97 = arith.constant 1.000000e+00 : f32
    %285 = vector.broadcast %cst_97 : f32 to vector<2x96xf32>
    %286 = arith.addf %285, %284 : vector<2x96xf32>
    %287 = arith.divf %285, %286 : vector<2x96xf32>
    %288 = vector.extract_strided_slice %280 {offsets = [0, 96], sizes = [2, 32], strides = [1, 1]} : vector<2x128xf32> to vector<2x32xf32>
    %289 = math.tanh %288 : vector<2x32xf32>
    %290 = vector.extract_strided_slice %287 {offsets = [0, 32], sizes = [2, 32], strides = [1, 1]} : vector<2x96xf32> to vector<2x32xf32>
    %291 = arith.mulf %290, %281 : vector<2x32xf32>
    %292 = vector.extract_strided_slice %287 {offsets = [0, 0], sizes = [2, 32], strides = [1, 1]} : vector<2x96xf32> to vector<2x32xf32>
    %293 = arith.mulf %292, %289 : vector<2x32xf32>
    %294 = arith.addf %291, %293 : vector<2x32xf32>
    %295 = vector.extract_strided_slice %287 {offsets = [0, 64], sizes = [2, 32], strides = [1, 1]} : vector<2x96xf32> to vector<2x32xf32>
    %296 = math.tanh %294 : vector<2x32xf32>
    %297 = arith.mulf %295, %296 : vector<2x32xf32>
    %c0_98 = arith.constant 0 : index
    %c0_99 = arith.constant 0 : index
    %c0_100 = arith.constant 0 : index
    %298 = vector.load %arg10[%c0_98, %c0_99, %c0_100] : memref<2x2x32xf32, #tpu.memory_space<vmem>>, vector<1x2x32xf32>
    %299 = vector.shape_cast %298 : vector<1x2x32xf32> to vector<2x32xf32>
    %300 = vector.shape_cast %275 : vector<2x32xf32> to vector<1x2x32xf32>
    tpu.vector_store %arg10[%c0_98, %c0_99, %c0_100], %300 {strides = array<i32>} : memref<2x2x32xf32, #tpu.memory_space<vmem>>, vector<1x2x32xf32>,
    %c1_101 = arith.constant 1 : index
    %c0_102 = arith.constant 0 : index
    %c0_103 = arith.constant 0 : index
    %301 = vector.load %arg10[%c1_101, %c0_102, %c0_103] : memref<2x2x32xf32, #tpu.memory_space<vmem>>, vector<1x2x32xf32>
    %302 = vector.shape_cast %301 : vector<1x2x32xf32> to vector<2x32xf32>
    %303 = vector.shape_cast %297 : vector<2x32xf32> to vector<1x2x32xf32>
    tpu.vector_store %arg10[%c1_101, %c0_102, %c0_103], %303 {strides = array<i32>} : memref<2x2x32xf32, #tpu.memory_space<vmem>>, vector<1x2x32xf32>,
    %304 = vector.extract_strided_slice %271 {offsets = [0, 0], sizes = [2, 32], strides = [1, 1]} : vector<4x32xf32> to vector<2x32xf32>
    %c0_104 = arith.constant 0 : index
    %c0_105 = arith.constant 0 : index
    %c0_106 = arith.constant 0 : index
    %305 = vector.load %arg11[%c0_104, %c0_105, %c0_106] : memref<2x2x32xf32, #tpu.memory_space<vmem>>, vector<1x2x32xf32>
    %306 = vector.shape_cast %305 : vector<1x2x32xf32> to vector<2x32xf32>
    %307 = vector.shape_cast %304 : vector<2x32xf32> to vector<1x2x32xf32>
    tpu.vector_store %arg11[%c0_104, %c0_105, %c0_106], %307 {strides = array<i32>} : memref<2x2x32xf32, #tpu.memory_space<vmem>>, vector<1x2x32xf32>,
    %c1_107 = arith.constant 1 : index
    %c0_108 = arith.constant 0 : index
    %c0_109 = arith.constant 0 : index
    %308 = vector.load %arg11[%c1_107, %c0_108, %c0_109] : memref<2x2x32xf32, #tpu.memory_space<vmem>>, vector<1x2x32xf32>
    %309 = vector.shape_cast %308 : vector<1x2x32xf32> to vector<2x32xf32>
    %310 = vector.shape_cast %294 : vector<2x32xf32> to vector<1x2x32xf32>
    tpu.vector_store %arg11[%c1_107, %c0_108, %c0_109], %310 {strides = array<i32>} : memref<2x2x32xf32, #tpu.memory_space<vmem>>, vector<1x2x32xf32>,
    %c0_110 = arith.constant 0 : index
    %c0_111 = arith.constant 0 : index
    %311 = vector.load %arg7[%c0_110, %c0_111] : memref<1x32xf32, #tpu.memory_space<vmem>>, vector<1x32xf32>
    %312 = vector.broadcast %311 : vector<1x32xf32> to vector<2x32xf32>
    %313 = arith.mulf %297, %312 : vector<2x32xf32>
    %cst_112 = arith.constant dense<0.000000e+00> : vector<2xf32>
    %314 = vector.multi_reduction <add>, %313, %cst_112 [1] : vector<2x32xf32> to vector<2xf32>
    %315 = vector.shape_cast %314 : vector<2xf32> to vector<2x1xf32>
    %c0_113 = arith.constant 0 : index
    %c0_114 = arith.constant 0 : index
    %316 = vector.load %arg8[%c0_113, %c0_114] : memref<1x1xf32, #tpu.memory_space<vmem>>, vector<1x1xf32>
    %317 = vector.broadcast %316 : vector<1x1xf32> to vector<2x1xf32>
    %318 = arith.addf %315, %317 : vector<2x1xf32>
    %319 = arith.negf %318 : vector<2x1xf32>
    %320 = math.exp %319 : vector<2x1xf32>
    %cst_115 = arith.constant 1.000000e+00 : f32
    %321 = vector.broadcast %cst_115 : f32 to vector<2x1xf32>
    %322 = arith.addf %321, %320 : vector<2x1xf32>
    %323 = arith.divf %321, %322 : vector<2x1xf32>
    %c0_116 = arith.constant 0 : index
    %c0_117 = arith.constant 0 : index
    %324 = vector.load %arg9[%c0_116, %c0_117] : memref<2x1xf32, #tpu.memory_space<vmem>>, vector<2x1xf32>
    tpu.vector_store %arg9[%c0_116, %c0_117], %323 {strides = array<i32>} : memref<2x1xf32, #tpu.memory_space<vmem>>, vector<2x1xf32>,
    return
  }
}

</mosaic_0001>

<llo_original>
// kernel: sentiment_forward.1
$region0: #{sentiment_forward.1}
  #allocation0 [shape = 'u32[]', space=smem, size = 0x4, offset = 0x4, fixed_abs, tag = 'smem constant byte address 0x4 - core index']
  #allocation1 [shape = 'u32[144,128]{1,0:T(1,128)}', space=vmem, size = 0x12000, scoped, tag = 'internal scratch']
  #allocation2 [shape = 'f32[1,1]{1,0:T(1,128)S(1)}', space=vmem, size = 0x200, scoped, tag = 'scoped memory for sentiment_forward.1']
  %s0 = inlined_call_operand.hbm [shape: s32[2,8], index: 0, kind: input, shape index: {}]
  %s1 = inlined_call_operand.hbm [shape: f32[2,2,32], index: 1, kind: input, shape index: {}]
  %s2 = inlined_call_operand.vmem [shape: f32[2,2,32], index: 2, kind: input, shape index: {}]
  %s3 = inlined_call_operand.hbm [shape: f32[100,1,128], index: 3, kind: input, shape index: {}]
  %s4 = inlined_call_operand.hbm [shape: f32[32,128], index: 4, kind: input, shape index: {}]
  %s5 = inlined_call_operand.hbm [shape: f32[64,128], index: 5, kind: input, shape index: {}]
  %s6 = inlined_call_operand.vmem [shape: f32[1,128], index: 6, kind: input, shape index: {}]
  %s7 = inlined_call_operand.vmem [shape: f32[1,32], index: 7, kind: input, shape index: {}]
  %s8 = inlined_call_operand.<no memory space> [shape: f32[1,1], index: 8, kind: input, shape index: {}]
  %s9 = inlined_call_operand.vmem [shape: f32[2,1], index: 9, kind: output, shape index: {0}]
  %s10 = inlined_call_operand.hbm [shape: f32[2,2,32], index: 10, kind: output, shape index: {1}]
  %s11 = inlined_call_operand.hbm [shape: f32[2,2,32], index: 11, kind: output, shape index: {2}]
  %12 = xla_tuple %s9, %s10, %s11
  %s13 = sld [smem:[#allocation0]]
  $region82: #{sentiment_forward.1} parent=0
    _
  %s15 = ssub.s32 1, %s13
  %s16 = scalar_select 0, %s15, %s13
  %v17 = vstv %s8
  %18 = vst [vmem:[#allocation2] sm:$0x1] %v17
  $region1: #{sentiment_forward.1} parent=0
    #allocation3 [shape = 'u8[1024]{0}', space=smem, size = 0x400, scoped, tag = 'input window, operand 0, single buffered']
    #allocation4 [shape = 's32[1]{0}', space=sflag, size = 0x4, scoped, tag = 'scoped memory for sentiment_forward.1']
    #allocation5 [shape = 's32[1]{0}', space=sflag, size = 0x4, scoped, tag = 'scoped memory for sentiment_forward.1']
    #allocation6 [shape = 's32[1]{0}', space=sflag, size = 0x4, scoped, tag = 'scoped memory for sentiment_forward.1']
    #allocation7 [shape = 'u8[2048]{0}', space=vmem, size = 0x800, scoped, tag = 'input window, operand 1, single buffered']
    #allocation8 [shape = 'u8[51200]{0}', space=vmem, size = 0xc800, scoped, tag = 'input window, operand 3, single buffered']
    #allocation9 [shape = 's32[1]{0}', space=sflag, size = 0x4, scoped, tag = 'scoped memory for sentiment_forward.1']
    #allocation10 [shape = 'u8[16384]{0}', space=vmem, size = 0x4000, scoped, tag = 'input window, operand 4, single buffered']
    #allocation11 [shape = 'u8[32768]{0}', space=vmem, size = 0x8000, scoped, tag = 'input window, operand 5, single buffered']
    #allocation12 [shape = 's32[1]{0}', space=sflag, size = 0x4, scoped, tag = 'scoped memory for sentiment_forward.1']
    #allocation13 [shape = 'u8[2048]{0}', space=vmem, size = 0x800, scoped, tag = 'output window, operand 1, single buffered']
    #allocation14 [shape = 'u8[2048]{0}', space=vmem, size = 0x800, scoped, tag = 'output window, operand 2, single buffered']
    #allocation15 [shape = 's32[1]{0}', space=sflag, size = 0x4, scoped, tag = 'scoped memory for sentiment_forward.1']
    %19 = vsyncpa [#allocation6], 0
    %20 = vsyncpa [#allocation4], 0
    %21 = vsyncpa [#allocation9], 0
    %22 = vsyncpa [#allocation12], 0
    %23 = vsyncpa [#allocation5], 0
    %24 = vsyncpa [#allocation15], 0
    // Predicated region
    $region2: #{sentiment_forward.1} parent=1 // pred_check
      _
    $region3: #{sentiment_forward.1} parent=1 // pred_check_branch
      %26 = sbr.rel (0) target = $region5
    $region4: #{sentiment_forward.1} parent=1 // pred_region
      %s28 = ssub.s32 32, 32
      %29 = vsyncadd [#allocation6], %s28
      %32 = dma.hbm_to_smem %s0, 32, [#allocation3], [#allocation6]
    $region5: #{sentiment_forward.1} parent=1 // pred_fallthru
      _
    // Predicated region
    $region6: #{sentiment_forward.1} parent=1 // pred_check
      _
    $region7: #{sentiment_forward.1} parent=1 // pred_check_branch
      %34 = sbr.rel (0) target = $region9
    $region8: #{sentiment_forward.1} parent=1 // pred_region
      %s36 = ssub.s32 64, 64
      %37 = vsyncadd [#allocation4], %s36
      %s38 = sshll.u32 [#allocation7], 4
      %s39 = int_to_ptr.vmem [resolvable:$true] %s38
      %44 = dma.hbm_to_vmem [thread:$0]  %s1, 64, %s39, [#allocation4], 32, 32, 2
    $region9: #{sentiment_forward.1} parent=1 // pred_fallthru
      _
    // Predicated region
    $region10: #{sentiment_forward.1} parent=1 // pred_check
      _
    $region11: #{sentiment_forward.1} parent=1 // pred_check_branch
      %46 = sbr.rel (0) target = $region13
    $region12: #{sentiment_forward.1} parent=1 // pred_region
      _
    $region13: #{sentiment_forward.1} parent=1 // pred_fallthru
      _
    // Predicated region
    $region14: #{sentiment_forward.1} parent=1 // pred_check
      _
    $region15: #{sentiment_forward.1} parent=1 // pred_check_branch
      %48 = sbr.rel (0) target = $region17
    $region16: #{sentiment_forward.1} parent=1 // pred_region
      %s50 = ssub.s32 1600, 1600
      %51 = vsyncadd [#allocation9], %s50
      %s52 = sshll.u32 [#allocation8], 4
      %s53 = int_to_ptr.vmem [resolvable:$true] %s52
      %58 = dma.hbm_to_vmem [thread:$0]  %s3, 1600, %s53, [#allocation9], 16, 16, 1
    $region17: #{sentiment_forward.1} parent=1 // pred_fallthru
      _
    // Predicated region
    $region18: #{sentiment_forward.1} parent=1 // pred_check
      _
    $region19: #{sentiment_forward.1} parent=1 // pred_check_branch
      %60 = sbr.rel (0) target = $region21
    $region20: #{sentiment_forward.1} parent=1 // pred_region
      %s62 = ssub.s32 512, 512
      %63 = vsyncadd [#allocation9], %s62
      %s64 = sshll.u32 [#allocation10], 4
      %s65 = int_to_ptr.vmem [resolvable:$true] %s64
      %70 = dma.hbm_to_vmem [thread:$0]  %s4, 512, %s65, [#allocation9], 128, 128, 8
    $region21: #{sentiment_forward.1} parent=1 // pred_fallthru
      _
    // Predicated region
    $region22: #{sentiment_forward.1} parent=1 // pred_check
      _
    $region23: #{sentiment_forward.1} parent=1 // pred_check_branch
      %72 = sbr.rel (0) target = $region25
    $region24: #{sentiment_forward.1} parent=1 // pred_region
      %s74 = ssub.s32 1024, 1024
      %75 = vsyncadd [#allocation12], %s74
      %s76 = sshll.u32 [#allocation11], 4
      %s77 = int_to_ptr.vmem [resolvable:$true] %s76
      %82 = dma.hbm_to_vmem [thread:$0]  %s5, 1024, %s77, [#allocation12], 128, 128, 8
    $region25: #{sentiment_forward.1} parent=1 // pred_fallthru
      _
    // Predicated region
    $region26: #{sentiment_forward.1} parent=1 // pred_check
      _
    $region27: #{sentiment_forward.1} parent=1 // pred_check_branch
      %84 = sbr.rel (0) target = $region29
    $region28: #{sentiment_forward.1} parent=1 // pred_region
      _
    $region29: #{sentiment_forward.1} parent=1 // pred_fallthru
      _
    // Predicated region
    $region30: #{sentiment_forward.1} parent=1 // pred_check
      _
    $region31: #{sentiment_forward.1} parent=1 // pred_check_branch
      %86 = sbr.rel (0) target = $region33
    $region32: #{sentiment_forward.1} parent=1 // pred_region
      _
    $region33: #{sentiment_forward.1} parent=1 // pred_fallthru
      _
    // Predicated region
    $region34: #{sentiment_forward.1} parent=1 // pred_check
      _
    $region35: #{sentiment_forward.1} parent=1 // pred_check_branch
      %88 = sbr.rel (0) target = $region37
    $region36: #{sentiment_forward.1} parent=1 // pred_region
      _
    $region37: #{sentiment_forward.1} parent=1 // pred_fallthru
      _
    // Predicated region
    $region38: #{sentiment_forward.1} parent=1 // pred_check
      _
    $region39: #{sentiment_forward.1} parent=1 // pred_check_branch
      %90 = sbr.rel (0) target = $region41
    $region40: #{sentiment_forward.1} parent=1 // pred_region
      %91 = dma.done [#allocation6], 32
    $region41: #{sentiment_forward.1} parent=1 // pred_fallthru
      _
    // Predicated region
    $region42: #{sentiment_forward.1} parent=1 // pred_check
      _
    $region43: #{sentiment_forward.1} parent=1 // pred_check_branch
      %93 = sbr.rel (0) target = $region45
    $region44: #{sentiment_forward.1} parent=1 // pred_region
      %94 = dma.done [#allocation4], 64
    $region45: #{sentiment_forward.1} parent=1 // pred_fallthru
      _
    // Predicated region
    $region46: #{sentiment_forward.1} parent=1 // pred_check
      _
    $region47: #{sentiment_forward.1} parent=1 // pred_check_branch
      %96 = sbr.rel (0) target = $region49
    $region48: #{sentiment_forward.1} parent=1 // pred_region
      %97 = dma.done [#allocation9], 1600
    $region49: #{sentiment_forward.1} parent=1 // pred_fallthru
      _
    // Predicated region
    $region50: #{sentiment_forward.1} parent=1 // pred_check
      _
    $region51: #{sentiment_forward.1} parent=1 // pred_check_branch
      %99 = sbr.rel (0) target = $region53
    $region52: #{sentiment_forward.1} parent=1 // pred_region
      %100 = dma.done [#allocation9], 512
    $region53: #{sentiment_forward.1} parent=1 // pred_fallthru
      _
    // Predicated region
    $region54: #{sentiment_forward.1} parent=1 // pred_check
      _
    $region55: #{sentiment_forward.1} parent=1 // pred_check_branch
      %102 = sbr.rel (0) target = $region57
    $region56: #{sentiment_forward.1} parent=1 // pred_region
      %103 = dma.done [#allocation12], 1024
    $region57: #{sentiment_forward.1} parent=1 // pred_fallthru
      _
    %104 = sfence
    %v105 = vld [vmem:[#allocation10] sm:$0xff]
    %v106 = vld [vmem:[#allocation10 + $0x8] sm:$0xff]
    %v107 = vld [vmem:[#allocation10 + $0x10] sm:$0xff]
    %v108 = vld [vmem:[#allocation10 + $0x18] sm:$0xff]
    %v109 = vld [vmem:[#allocation11] sm:$0xff]
    %v110 = vld [vmem:[#allocation11 + $0x8] sm:$0xff]
    %v111 = vld [vmem:[#allocation11 + $0x10] sm:$0xff]
    %v112 = vld [vmem:[#allocation11 + $0x18] sm:$0xff]
    %v113 = vld [vmem:[#allocation11 + $0x20] sm:$0xff]
    %v114 = vld [vmem:[#allocation11 + $0x28] sm:$0xff]
    %v115 = vld [vmem:[#allocation11 + $0x30] sm:$0xff]
    %v116 = vld [vmem:[#allocation11 + $0x38] sm:$0xff]
    %v117 = vld [vmem:[%s6] sm:$0x1]
    %v118 = vld [vmem:[#allocation7] sm:$0x3]
    %s119 = scalar_lea.vmem [#allocation7], 2
    %v120 = vld [vmem:[%s119] sm:$0x3]
    %v121 = vld [vmem:[%s2] sm:$0x3]
    %s122 = scalar_lea.vmem %s2, 2
    %v123 = vld [vmem:[%s122] sm:$0x3]
    %s124 = sld [smem:[#allocation3]]
    %s125 = scalar_lea.vmem [#allocation8], %s124
    %v126 = vld [vmem:[%s125] sm:$0x1]
    %s127 = sld [smem:[#allocation3 + $0x80]]
    %s128 = scalar_lea.vmem [#allocation8], %s127
    %v129 = vld [vmem:[%s128] sm:$0x1]
    %v131 = vlaneseq
    %v132 = vshrl.u32 %v131, 7
    %v133 = vsub.s32 0, %v132
    %v134 = vrot.slane %v129, %v133
    %vm136 = vcmask 1040384
    %v137 = vsel %vm136, %v126, %v134
    %vm138 = vcmask 261120
    %v140 = vsel %vm138, %v118, 0
    %142 = vmatprep.subr.mxu0 0.0
    %143 = vmatpush1.msra.mxu0 0.0
    %144 = vmatprep.subr.mxu0 0.0
    %145 = vmatpush1.msra.mxu0 0.0
    %146 = vmatprep.subr.mxu0 0.0
    %147 = vmatpush1.msra.mxu0 0.0
    %148 = vmatprep.subr.mxu0 0.0
    %149 = vmatpush1.msra.mxu0 0.0
    %150 = vmatprep.subr.mxu0 0.0
    %151 = vmatpush1.msra.mxu0 0.0
    %152 = vmatprep.subr.mxu0 0.0
    %153 = vmatpush1.msra.mxu0 0.0
    %154 = vmatprep.subr.mxu0 0.0
    %155 = vmatpush1.msra.mxu0 0.0
    %156 = vmatprep.subr.mxu0 0.0
    %157 = vmatpush1.msra.mxu0 0.0
    %158 = vmatprep.subr.mxu0 0.0
    %159 = vmatpush1.msra.mxu0 0.0
    %160 = vmatprep.subr.mxu0 0.0
    %161 = vmatpush1.msra.mxu0 0.0
    %162 = vmatprep.subr.mxu0 0.0
    %163 = vmatpush1.msra.mxu0 0.0
    %164 = vmatprep.subr.mxu0 0.0
    %165 = vmatpush1.msra.mxu0 0.0
    %166 = vmatprep.subr.mxu0 0.0
    %167 = vmatpush1.msra.mxu0 %v108
    %168 = vmatprep.subr.mxu0 0.0
    %169 = vmatpush1.msra.mxu0 %v107
    %170 = vmatprep.subr.mxu0 0.0
    %171 = vmatpush1.msra.mxu0 %v106
    %172 = vmatprep.subr.mxu0 0.0
    %173 = vmatpush1.msra.mxu0 %v105
    %174 = vmatprep.subr.mxu0 0.0
    %175 = vmatpush2.msra.mxu0 0.0
    %176 = vmatprep.subr.mxu0 0.0
    %177 = vmatpush2.msra.mxu0 0.0
    %178 = vmatprep.subr.mxu0 0.0
    %179 = vmatpush2.msra.mxu0 0.0
    %180 = vmatprep.subr.mxu0 0.0
    %181 = vmatpush2.msra.mxu0 0.0
    %182 = vmatprep.subr.mxu0 0.0
    %183 = vmatpush2.msra.mxu0 0.0
    %184 = vmatprep.subr.mxu0 0.0
    %185 = vmatpush2.msra.mxu0 0.0
    %186 = vmatprep.subr.mxu0 0.0
    %187 = vmatpush2.msra.mxu0 0.0
    %188 = vmatprep.subr.mxu0 0.0
    %189 = vmatpush2.msra.mxu0 0.0
    %190 = vmatprep.subr.mxu0 0.0
    %191 = vmatpush2.msra.mxu0 0.0
    %192 = vmatprep.subr.mxu0 0.0
    %193 = vmatpush2.msra.mxu0 0.0
    %194 = vmatprep.subr.mxu0 0.0
    %195 = vmatpush2.msra.mxu0 0.0
    %196 = vmatprep.subr.mxu0 0.0
    %197 = vmatpush2.msra.mxu0 0.0
    %198 = vmatprep.subr.mxu0 0.0
    %199 = vmatpush2.msra.mxu0 0.0
    %200 = vmatprep.subr.mxu0 0.0
    %201 = vmatpush2.msra.mxu0 0.0
    %202 = vmatprep.subr.mxu0 0.0
    %203 = vmatpush2.msra.mxu0 0.0
    %204 = vmatprep.subr.mxu0 0.0
    %205 = vmatpush2.msra.mxu0 0.0
    %206 = vmatprep.mubr.f32.mxu0 0.0
    %207 = vmatmul.mubr.f32.gmra.mxu0 %v140
    %v208 = vpop.f32.mrf.mxu0
    %v209 = vadd.f32 0.0, %v208
    %v210 = vpop.f32.mrf.mxu0
    %211 = vdwg.mxu0
    %v212 = vadd.f32 %v137, %v209
    %v213 = vxor.u32 %v212, 2147483648
    %v214 = vmul.f32 %v213, 1.442695
    %v215 = vpow.pop %v214
    %v216 = vadd.f32 %v215, 1.0
    %v217 = vrcp.pop %v216
    %v218 = vmul.f32 1.0, %v217
    %v219 = vtanh.pop %v212
    %221 = vrot.lane.b32.xlu0 %v121, 32
    %v222 = vpop.permute.xlu0 %221
    %v224 = vmul.f32 %v218, %v222
    %226 = vrot.lane.b32.xlu0 %v219, 32
    %v227 = vpop.permute.xlu0 %226
    %v229 = vmul.f32 %v218, %v227
    %231 = vrot.lane.b32.xlu0 %v229, 32
    %v232 = vpop.permute.xlu0 %231
    %v234 = vadd.f32 %v224, %v232
    %v235 = vtanh.pop %v234
    %237 = vrot.lane.b32.xlu0 %v235, 32
    %v238 = vpop.permute.xlu0 %237
    %v240 = vmul.f32 %v218, %v238
    %v242 = vrot.slane %v123, 6
    %243 = vrot.lane.b32.xlu0 %v242, 32
    %v244 = vpop.permute.xlu0 %243
    %vm246 = vcmask 1041408
    %v247 = vsel %vm246, %v234, %v244
    %s248 = sld [smem:[#allocation3 + $0x1]]
    %s249 = scalar_lea.vmem [#allocation8], %s248
    %v250 = vld [vmem:[%s249] sm:$0x1]
    %s251 = sld [smem:[#allocation3 + $0x81]]
    %s252 = scalar_lea.vmem [#allocation8], %s251
    %v253 = vld [vmem:[%s252] sm:$0x1]
    %v255 = vlaneseq
    %v256 = vshrl.u32 %v255, 7
    %v257 = vsub.s32 0, %v256
    %v258 = vrot.slane %v253, %v257
    %v260 = vsel %vm136, %v250, %v258
    %262 = vrot.lane.b32.xlu0 %v240, 64
    %v263 = vpop.permute.xlu0 %262
    %v264 = vsel %vm138, %v263, 0
    %266 = vmatprep.subr.mxu0 0.0
    %267 = vmatpush1.msra.mxu0 0.0
    %268 = vmatprep.subr.mxu0 0.0
    %269 = vmatpush1.msra.mxu0 0.0
    %270 = vmatprep.subr.mxu0 0.0
    %271 = vmatpush1.msra.mxu0 0.0
    %272 = vmatprep.subr.mxu0 0.0
    %273 = vmatpush1.msra.mxu0 0.0
    %274 = vmatprep.subr.mxu0 0.0
    %275 = vmatpush1.msra.mxu0 0.0
    %276 = vmatprep.subr.mxu0 0.0
    %277 = vmatpush1.msra.mxu0 0.0
    %278 = vmatprep.subr.mxu0 0.0
    %279 = vmatpush1.msra.mxu0 0.0
    %280 = vmatprep.subr.mxu0 0.0
    %281 = vmatpush1.msra.mxu0 0.0
    %282 = vmatprep.subr.mxu0 0.0
    %283 = vmatpush1.msra.mxu0 0.0
    %284 = vmatprep.subr.mxu0 0.0
    %285 = vmatpush1.msra.mxu0 0.0
    %286 = vmatprep.subr.mxu0 0.0
    %287 = vmatpush1.msra.mxu0 0.0
    %288 = vmatprep.subr.mxu0 0.0
    %289 = vmatpush1.msra.mxu0 0.0
    %290 = vmatprep.subr.mxu0 0.0
    %291 = vmatpush1.msra.mxu0 %v108
    %292 = vmatprep.subr.mxu0 0.0
    %293 = vmatpush1.msra.mxu0 %v107
    %294 = vmatprep.subr.mxu0 0.0
    %295 = vmatpush1.msra.mxu0 %v106
    %296 = vmatprep.subr.mxu0 0.0
    %297 = vmatpush1.msra.mxu0 %v105
    %298 = vmatprep.subr.mxu0 0.0
    %299 = vmatpush2.msra.mxu0 0.0
    %300 = vmatprep.subr.mxu0 0.0
    %301 = vmatpush2.msra.mxu0 0.0
    %302 = vmatprep.subr.mxu0 0.0
    %303 = vmatpush2.msra.mxu0 0.0
    %304 = vmatprep.subr.mxu0 0.0
    %305 = vmatpush2.msra.mxu0 0.0
    %306 = vmatprep.subr.mxu0 0.0
    %307 = vmatpush2.msra.mxu0 0.0
    %308 = vmatprep.subr.mxu0 0.0
    %309 = vmatpush2.msra.mxu0 0.0
    %310 = vmatprep.subr.mxu0 0.0
    %311 = vmatpush2.msra.mxu0 0.0
    %312 = vmatprep.subr.mxu0 0.0
    %313 = vmatpush2.msra.mxu0 0.0
    %314 = vmatprep.subr.mxu0 0.0
    %315 = vmatpush2.msra.mxu0 0.0
    %316 = vmatprep.subr.mxu0 0.0
    %317 = vmatpush2.msra.mxu0 0.0
    %318 = vmatprep.subr.mxu0 0.0
    %319 = vmatpush2.msra.mxu0 0.0
    %320 = vmatprep.subr.mxu0 0.0
    %321 = vmatpush2.msra.mxu0 0.0
    %322 = vmatprep.subr.mxu0 0.0
    %323 = vmatpush2.msra.mxu0 0.0
    %324 = vmatprep.subr.mxu0 0.0
    %325 = vmatpush2.msra.mxu0 0.0
    %326 = vmatprep.subr.mxu0 0.0
    %327 = vmatpush2.msra.mxu0 0.0
    %328 = vmatprep.subr.mxu0 0.0
    %329 = vmatpush2.msra.mxu0 0.0
    %330 = vmatprep.mubr.f32.mxu0 0.0
    %331 = vmatmul.mubr.f32.gmra.mxu0 %v264
    %v332 = vpop.f32.mrf.mxu0
    %v333 = vadd.f32 0.0, %v332
    %v334 = vpop.f32.mrf.mxu0
    %335 = vdwg.mxu0
    %v336 = vadd.f32 %v260, %v333
    %339 = vrot.lane.b32.xlu0 %v120, 32
    %v340 = vpop.permute.xlu0 %339
    %v342 = vsel %vm138, %v263, %v340
    %v344 = vlaneseq
    %v345 = vshrl.u32 %v344, 7
    %v346 = vsub.s32 0, %v345
    %v347 = vrot.slane %v117, %v346
    %vm349 = vcmask 523264
    %v351 = vsel %vm349, %v342, 0
    %353 = vmatprep.subr.mxu0 0.0
    %354 = vmatpush1.msra.mxu0 0.0
    %355 = vmatprep.subr.mxu0 0.0
    %356 = vmatpush1.msra.mxu0 0.0
    %357 = vmatprep.subr.mxu0 0.0
    %358 = vmatpush1.msra.mxu0 0.0
    %359 = vmatprep.subr.mxu0 0.0
    %360 = vmatpush1.msra.mxu0 0.0
    %361 = vmatprep.subr.mxu0 0.0
    %362 = vmatpush1.msra.mxu0 0.0
    %363 = vmatprep.subr.mxu0 0.0
    %364 = vmatpush1.msra.mxu0 0.0
    %365 = vmatprep.subr.mxu0 0.0
    %366 = vmatpush1.msra.mxu0 0.0
    %367 = vmatprep.subr.mxu0 0.0
    %368 = vmatpush1.msra.mxu0 0.0
    %369 = vmatprep.subr.mxu0 0.0
    %370 = vmatpush1.msra.mxu0 %v116
    %371 = vmatprep.subr.mxu0 0.0
    %372 = vmatpush1.msra.mxu0 %v115
    %373 = vmatprep.subr.mxu0 0.0
    %374 = vmatpush1.msra.mxu0 %v114
    %375 = vmatprep.subr.mxu0 0.0
    %376 = vmatpush1.msra.mxu0 %v113
    %377 = vmatprep.subr.mxu0 0.0
    %378 = vmatpush1.msra.mxu0 %v112
    %379 = vmatprep.subr.mxu0 0.0
    %380 = vmatpush1.msra.mxu0 %v111
    %381 = vmatprep.subr.mxu0 0.0
    %382 = vmatpush1.msra.mxu0 %v110
    %383 = vmatprep.subr.mxu0 0.0
    %384 = vmatpush1.msra.mxu0 %v109
    %385 = vmatprep.subr.mxu0 0.0
    %386 = vmatpush2.msra.mxu0 0.0
    %387 = vmatprep.subr.mxu0 0.0
    %388 = vmatpush2.msra.mxu0 0.0
    %389 = vmatprep.subr.mxu0 0.0
    %390 = vmatpush2.msra.mxu0 0.0
    %391 = vmatprep.subr.mxu0 0.0
    %392 = vmatpush2.msra.mxu0 0.0
    %393 = vmatprep.subr.mxu0 0.0
    %394 = vmatpush2.msra.mxu0 0.0
    %395 = vmatprep.subr.mxu0 0.0
    %396 = vmatpush2.msra.mxu0 0.0
    %397 = vmatprep.subr.mxu0 0.0
    %398 = vmatpush2.msra.mxu0 0.0
    %399 = vmatprep.subr.mxu0 0.0
    %400 = vmatpush2.msra.mxu0 0.0
    %401 = vmatprep.subr.mxu0 0.0
    %402 = vmatpush2.msra.mxu0 0.0
    %403 = vmatprep.subr.mxu0 0.0
    %404 = vmatpush2.msra.mxu0 0.0
    %405 = vmatprep.subr.mxu0 0.0
    %406 = vmatpush2.msra.mxu0 0.0
    %407 = vmatprep.subr.mxu0 0.0
    %408 = vmatpush2.msra.mxu0 0.0
    %409 = vmatprep.subr.mxu0 0.0
    %410 = vmatpush2.msra.mxu0 0.0
    %411 = vmatprep.subr.mxu0 0.0
    %412 = vmatpush2.msra.mxu0 0.0
    %413 = vmatprep.subr.mxu0 0.0
    %414 = vmatpush2.msra.mxu0 0.0
    %415 = vmatprep.subr.mxu0 0.0
    %416 = vmatpush2.msra.mxu0 0.0
    %417 = vmatprep.mubr.f32.mxu0 0.0
    %418 = vmatmul.mubr.f32.gmra.mxu0 %v351
    %v419 = vpop.f32.mrf.mxu0
    %v420 = vadd.f32 %v347, %v419
    %v421 = vpop.f32.mrf.mxu0
    %422 = vdwg.mxu0
    %v424 = vrot.slane %v420, 6
    %v426 = vsel %vm246, %v336, %v424
    %v427 = vxor.u32 %v426, 2147483648
    %v428 = vmul.f32 %v427, 1.442695
    %v429 = vpow.pop %v428
    %v430 = vadd.f32 %v429, 1.0
    %v431 = vrcp.pop %v430
    %v432 = vmul.f32 1.0, %v431
    %v433 = vtanh.pop %v426
    %v434 = vmul.f32 %v432, %v247
    %436 = vrot.lane.b32.xlu0 %v433, 32
    %v437 = vpop.permute.xlu0 %436
    %v439 = vmul.f32 %v432, %v437
    %441 = vrot.lane.b32.xlu0 %v439, 32
    %v442 = vpop.permute.xlu0 %441
    %v444 = vadd.f32 %v434, %v442
    %v445 = vtanh.pop %v444
    %447 = vrot.lane.b32.xlu0 %v445, 32
    %v448 = vpop.permute.xlu0 %447
    %v450 = vmul.f32 %v432, %v448
    %s451 = sld [smem:[#allocation3 + $0x2]]
    %s452 = scalar_lea.vmem [#allocation8], %s451
    %v453 = vld [vmem:[%s452] sm:$0x1]
    %s454 = sld [smem:[#allocation3 + $0x82]]
    %s455 = scalar_lea.vmem [#allocation8], %s454
    %v456 = vld [vmem:[%s455] sm:$0x1]
    %v458 = vlaneseq
    %v459 = vshrl.u32 %v458, 7
    %v460 = vsub.s32 0, %v459
    %v461 = vrot.slane %v456, %v460
    %v463 = vsel %vm136, %v453, %v461
    %465 = vrot.lane.b32.xlu0 %v450, 64
    %v466 = vpop.permute.xlu0 %465
    %v467 = vsel %vm138, %v466, 0
    %469 = vmatprep.subr.mxu0 0.0
    %470 = vmatpush1.msra.mxu0 0.0
    %471 = vmatprep.subr.mxu0 0.0
    %472 = vmatpush1.msra.mxu0 0.0
    %473 = vmatprep.subr.mxu0 0.0
    %474 = vmatpush1.msra.mxu0 0.0
    %475 = vmatprep.subr.mxu0 0.0
    %476 = vmatpush1.msra.mxu0 0.0
    %477 = vmatprep.subr.mxu0 0.0
    %478 = vmatpush1.msra.mxu0 0.0
    %479 = vmatprep.subr.mxu0 0.0
    %480 = vmatpush1.msra.mxu0 0.0
    %481 = vmatprep.subr.mxu0 0.0
    %482 = vmatpush1.msra.mxu0 0.0
    %483 = vmatprep.subr.mxu0 0.0
    %484 = vmatpush1.msra.mxu0 0.0
    %485 = vmatprep.subr.mxu0 0.0
    %486 = vmatpush1.msra.mxu0 0.0
    %487 = vmatprep.subr.mxu0 0.0
    %488 = vmatpush1.msra.mxu0 0.0
    %489 = vmatprep.subr.mxu0 0.0
    %490 = vmatpush1.msra.mxu0 0.0
    %491 = vmatprep.subr.mxu0 0.0
    %492 = vmatpush1.msra.mxu0 0.0
    %493 = vmatprep.subr.mxu0 0.0
    %494 = vmatpush1.msra.mxu0 %v108
    %495 = vmatprep.subr.mxu0 0.0
    %496 = vmatpush1.msra.mxu0 %v107
    %497 = vmatprep.subr.mxu0 0.0
    %498 = vmatpush1.msra.mxu0 %v106
    %499 = vmatprep.subr.mxu0 0.0
    %500 = vmatpush1.msra.mxu0 %v105
    %501 = vmatprep.subr.mxu0 0.0
    %502 = vmatpush2.msra.mxu0 0.0
    %503 = vmatprep.subr.mxu0 0.0
    %504 = vmatpush2.msra.mxu0 0.0
    %505 = vmatprep.subr.mxu0 0.0
    %506 = vmatpush2.msra.mxu0 0.0
    %507 = vmatprep.subr.mxu0 0.0
    %508 = vmatpush2.msra.mxu0 0.0
    %509 = vmatprep.subr.mxu0 0.0
    %510 = vmatpush2.msra.mxu0 0.0
    %511 = vmatprep.subr.mxu0 0.0
    %512 = vmatpush2.msra.mxu0 0.0
    %513 = vmatprep.subr.mxu0 0.0
    %514 = vmatpush2.msra.mxu0 0.0
    %515 = vmatprep.subr.mxu0 0.0
    %516 = vmatpush2.msra.mxu0 0.0
    %517 = vmatprep.subr.mxu0 0.0
    %518 = vmatpush2.msra.mxu0 0.0
    %519 = vmatprep.subr.mxu0 0.0
    %520 = vmatpush2.msra.mxu0 0.0
    %521 = vmatprep.subr.mxu0 0.0
    %522 = vmatpush2.msra.mxu0 0.0
    %523 = vmatprep.subr.mxu0 0.0
    %524 = vmatpush2.msra.mxu0 0.0
    %525 = vmatprep.subr.mxu0 0.0
    %526 = vmatpush2.msra.mxu0 0.0
    %527 = vmatprep.subr.mxu0 0.0
    %528 = vmatpush2.msra.mxu0 0.0
    %529 = vmatprep.subr.mxu0 0.0
    %530 = vmatpush2.msra.mxu0 0.0
    %531 = vmatprep.subr.mxu0 0.0
    %532 = vmatpush2.msra.mxu0 0.0
    %533 = vmatprep.mubr.f32.mxu0 0.0
    %534 = vmatmul.mubr.f32.gmra.mxu0 %v467
    %v535 = vpop.f32.mrf.mxu0
    %v536 = vadd.f32 0.0, %v535
    %v537 = vpop.f32.mrf.mxu0
    %538 = vdwg.mxu0
    %v539 = vadd.f32 %v463, %v536
    %v541 = vrot.slane %v450, 2
    %542 = vrot.lane.b32.xlu0 %v541, 96
    %v543 = vpop.permute.xlu0 %542
    %v545 = vsel %vm138, %v466, %v543
    %v547 = vsel %vm349, %v545, 0
    %549 = vmatprep.subr.mxu0 0.0
    %550 = vmatpush1.msra.mxu0 0.0
    %551 = vmatprep.subr.mxu0 0.0
    %552 = vmatpush1.msra.mxu0 0.0
    %553 = vmatprep.subr.mxu0 0.0
    %554 = vmatpush1.msra.mxu0 0.0
    %555 = vmatprep.subr.mxu0 0.0
    %556 = vmatpush1.msra.mxu0 0.0
    %557 = vmatprep.subr.mxu0 0.0
    %558 = vmatpush1.msra.mxu0 0.0
    %559 = vmatprep.subr.mxu0 0.0
    %560 = vmatpush1.msra.mxu0 0.0
    %561 = vmatprep.subr.mxu0 0.0
    %562 = vmatpush1.msra.mxu0 0.0
    %563 = vmatprep.subr.mxu0 0.0
    %564 = vmatpush1.msra.mxu0 0.0
    %565 = vmatprep.subr.mxu0 0.0
    %566 = vmatpush1.msra.mxu0 %v116
    %567 = vmatprep.subr.mxu0 0.0
    %568 = vmatpush1.msra.mxu0 %v115
    %569 = vmatprep.subr.mxu0 0.0
    %570 = vmatpush1.msra.mxu0 %v114
    %571 = vmatprep.subr.mxu0 0.0
    %572 = vmatpush1.msra.mxu0 %v113
    %573 = vmatprep.subr.mxu0 0.0
    %574 = vmatpush1.msra.mxu0 %v112
    %575 = vmatprep.subr.mxu0 0.0
    %576 = vmatpush1.msra.mxu0 %v111
    %577 = vmatprep.subr.mxu0 0.0
    %578 = vmatpush1.msra.mxu0 %v110
    %579 = vmatprep.subr.mxu0 0.0
    %580 = vmatpush1.msra.mxu0 %v109
    %581 = vmatprep.subr.mxu0 0.0
    %582 = vmatpush2.msra.mxu0 0.0
    %583 = vmatprep.subr.mxu0 0.0
    %584 = vmatpush2.msra.mxu0 0.0
    %585 = vmatprep.subr.mxu0 0.0
    %586 = vmatpush2.msra.mxu0 0.0
    %587 = vmatprep.subr.mxu0 0.0
    %588 = vmatpush2.msra.mxu0 0.0
    %589 = vmatprep.subr.mxu0 0.0
    %590 = vmatpush2.msra.mxu0 0.0
    %591 = vmatprep.subr.mxu0 0.0
    %592 = vmatpush2.msra.mxu0 0.0
    %593 = vmatprep.subr.mxu0 0.0
    %594 = vmatpush2.msra.mxu0 0.0
    %595 = vmatprep.subr.mxu0 0.0
    %596 = vmatpush2.msra.mxu0 0.0
    %597 = vmatprep.subr.mxu0 0.0
    %598 = vmatpush2.msra.mxu0 0.0
    %599 = vmatprep.subr.mxu0 0.0
    %600 = vmatpush2.msra.mxu0 0.0
    %601 = vmatprep.subr.mxu0 0.0
    %602 = vmatpush2.msra.mxu0 0.0
    %603 = vmatprep.subr.mxu0 0.0
    %604 = vmatpush2.msra.mxu0 0.0
    %605 = vmatprep.subr.mxu0 0.0
    %606 = vmatpush2.msra.mxu0 0.0
    %607 = vmatprep.subr.mxu0 0.0
    %608 = vmatpush2.msra.mxu0 0.0
    %609 = vmatprep.subr.mxu0 0.0
    %610 = vmatpush2.msra.mxu0 0.0
    %611 = vmatprep.subr.mxu0 0.0
    %612 = vmatpush2.msra.mxu0 0.0
    %613 = vmatprep.mubr.f32.mxu0 0.0
    %614 = vmatmul.mubr.f32.gmra.mxu0 %v547
    %v615 = vpop.f32.mrf.mxu0
    %v616 = vadd.f32 %v347, %v615
    %v617 = vpop.f32.mrf.mxu0
    %618 = vdwg.mxu0
    %v620 = vrot.slane %v616, 6
    %v622 = vsel %vm246, %v539, %v620
    %v623 = vxor.u32 %v622, 2147483648
    %v624 = vmul.f32 %v623, 1.442695
    %v625 = vpow.pop %v624
    %v626 = vadd.f32 %v625, 1.0
    %v627 = vrcp.pop %v626
    %v628 = vmul.f32 1.0, %v627
    %v629 = vtanh.pop %v622
    %v630 = vmul.f32 %v628, %v444
    %632 = vrot.lane.b32.xlu0 %v629, 32
    %v633 = vpop.permute.xlu0 %632
    %v635 = vmul.f32 %v628, %v633
    %637 = vrot.lane.b32.xlu0 %v635, 32
    %v638 = vpop.permute.xlu0 %637
    %v640 = vadd.f32 %v630, %v638
    %v641 = vtanh.pop %v640
    %643 = vrot.lane.b32.xlu0 %v641, 32
    %v644 = vpop.permute.xlu0 %643
    %v646 = vmul.f32 %v628, %v644
    %s647 = sld [smem:[#allocation3 + $0x3]]
    %s648 = scalar_lea.vmem [#allocation8], %s647
    %v649 = vld [vmem:[%s648] sm:$0x1]
    %s650 = sld [smem:[#allocation3 + $0x83]]
    %s651 = scalar_lea.vmem [#allocation8], %s650
    %v652 = vld [vmem:[%s651] sm:$0x1]
    %v654 = vlaneseq
    %v655 = vshrl.u32 %v654, 7
    %v656 = vsub.s32 0, %v655
    %v657 = vrot.slane %v652, %v656
    %v659 = vsel %vm136, %v649, %v657
    %661 = vrot.lane.b32.xlu0 %v646, 64
    %v662 = vpop.permute.xlu0 %661
    %v663 = vsel %vm138, %v662, 0
    %665 = vmatprep.subr.mxu0 0.0
    %666 = vmatpush1.msra.mxu0 0.0
    %667 = vmatprep.subr.mxu0 0.0
    %668 = vmatpush1.msra.mxu0 0.0
    %669 = vmatprep.subr.mxu0 0.0
    %670 = vmatpush1.msra.mxu0 0.0
    %671 = vmatprep.subr.mxu0 0.0
    %672 = vmatpush1.msra.mxu0 0.0
    %673 = vmatprep.subr.mxu0 0.0
    %674 = vmatpush1.msra.mxu0 0.0
    %675 = vmatprep.subr.mxu0 0.0
    %676 = vmatpush1.msra.mxu0 0.0
    %677 = vmatprep.subr.mxu0 0.0
    %678 = vmatpush1.msra.mxu0 0.0
    %679 = vmatprep.subr.mxu0 0.0
    %680 = vmatpush1.msra.mxu0 0.0
    %681 = vmatprep.subr.mxu0 0.0
    %682 = vmatpush1.msra.mxu0 0.0
    %683 = vmatprep.subr.mxu0 0.0
    %684 = vmatpush1.msra.mxu0 0.0
    %685 = vmatprep.subr.mxu0 0.0
    %686 = vmatpush1.msra.mxu0 0.0
    %687 = vmatprep.subr.mxu0 0.0
    %688 = vmatpush1.msra.mxu0 0.0
    %689 = vmatprep.subr.mxu0 0.0
    %690 = vmatpush1.msra.mxu0 %v108
    %691 = vmatprep.subr.mxu0 0.0
    %692 = vmatpush1.msra.mxu0 %v107
    %693 = vmatprep.subr.mxu0 0.0
    %694 = vmatpush1.msra.mxu0 %v106
    %695 = vmatprep.subr.mxu0 0.0
    %696 = vmatpush1.msra.mxu0 %v105
    %697 = vmatprep.subr.mxu0 0.0
    %698 = vmatpush2.msra.mxu0 0.0
    %699 = vmatprep.subr.mxu0 0.0
    %700 = vmatpush2.msra.mxu0 0.0
    %701 = vmatprep.subr.mxu0 0.0
    %702 = vmatpush2.msra.mxu0 0.0
    %703 = vmatprep.subr.mxu0 0.0
    %704 = vmatpush2.msra.mxu0 0.0
    %705 = vmatprep.subr.mxu0 0.0
    %706 = vmatpush2.msra.mxu0 0.0
    %707 = vmatprep.subr.mxu0 0.0
    %708 = vmatpush2.msra.mxu0 0.0
    %709 = vmatprep.subr.mxu0 0.0
    %710 = vmatpush2.msra.mxu0 0.0
    %711 = vmatprep.subr.mxu0 0.0
    %712 = vmatpush2.msra.mxu0 0.0
    %713 = vmatprep.subr.mxu0 0.0
    %714 = vmatpush2.msra.mxu0 0.0
    %715 = vmatprep.subr.mxu0 0.0
    %716 = vmatpush2.msra.mxu0 0.0
    %717 = vmatprep.subr.mxu0 0.0
    %718 = vmatpush2.msra.mxu0 0.0
    %719 = vmatprep.subr.mxu0 0.0
    %720 = vmatpush2.msra.mxu0 0.0
    %721 = vmatprep.subr.mxu0 0.0
    %722 = vmatpush2.msra.mxu0 0.0
    %723 = vmatprep.subr.mxu0 0.0
    %724 = vmatpush2.msra.mxu0 0.0
    %725 = vmatprep.subr.mxu0 0.0
    %726 = vmatpush2.msra.mxu0 0.0
    %727 = vmatprep.subr.mxu0 0.0
    %728 = vmatpush2.msra.mxu0 0.0
    %729 = vmatprep.mubr.f32.mxu0 0.0
    %730 = vmatmul.mubr.f32.gmra.mxu0 %v663
    %v731 = vpop.f32.mrf.mxu0
    %v732 = vadd.f32 0.0, %v731
    %v733 = vpop.f32.mrf.mxu0
    %734 = vdwg.mxu0
    %v735 = vadd.f32 %v659, %v732
    %v737 = vrot.slane %v646, 2
    %738 = vrot.lane.b32.xlu0 %v737, 96
    %v739 = vpop.permute.xlu0 %738
    %v741 = vsel %vm138, %v662, %v739
    %v743 = vsel %vm349, %v741, 0
    %745 = vmatprep.subr.mxu0 0.0
    %746 = vmatpush1.msra.mxu0 0.0
    %747 = vmatprep.subr.mxu0 0.0
    %748 = vmatpush1.msra.mxu0 0.0
    %749 = vmatprep.subr.mxu0 0.0
    %750 = vmatpush1.msra.mxu0 0.0
    %751 = vmatprep.subr.mxu0 0.0
    %752 = vmatpush1.msra.mxu0 0.0
    %753 = vmatprep.subr.mxu0 0.0
    %754 = vmatpush1.msra.mxu0 0.0
    %755 = vmatprep.subr.mxu0 0.0
    %756 = vmatpush1.msra.mxu0 0.0
    %757 = vmatprep.subr.mxu0 0.0
    %758 = vmatpush1.msra.mxu0 0.0
    %759 = vmatprep.subr.mxu0 0.0
    %760 = vmatpush1.msra.mxu0 0.0
    %761 = vmatprep.subr.mxu0 0.0
    %762 = vmatpush1.msra.mxu0 %v116
    %763 = vmatprep.subr.mxu0 0.0
    %764 = vmatpush1.msra.mxu0 %v115
    %765 = vmatprep.subr.mxu0 0.0
    %766 = vmatpush1.msra.mxu0 %v114
    %767 = vmatprep.subr.mxu0 0.0
    %768 = vmatpush1.msra.mxu0 %v113
    %769 = vmatprep.subr.mxu0 0.0
    %770 = vmatpush1.msra.mxu0 %v112
    %771 = vmatprep.subr.mxu0 0.0
    %772 = vmatpush1.msra.mxu0 %v111
    %773 = vmatprep.subr.mxu0 0.0
    %774 = vmatpush1.msra.mxu0 %v110
    %775 = vmatprep.subr.mxu0 0.0
    %776 = vmatpush1.msra.mxu0 %v109
    %777 = vmatprep.subr.mxu0 0.0
    %778 = vmatpush2.msra.mxu0 0.0
    %779 = vmatprep.subr.mxu0 0.0
    %780 = vmatpush2.msra.mxu0 0.0
    %781 = vmatprep.subr.mxu0 0.0
    %782 = vmatpush2.msra.mxu0 0.0
    %783 = vmatprep.subr.mxu0 0.0
    %784 = vmatpush2.msra.mxu0 0.0
    %785 = vmatprep.subr.mxu0 0.0
    %786 = vmatpush2.msra.mxu0 0.0
    %787 = vmatprep.subr.mxu0 0.0
    %788 = vmatpush2.msra.mxu0 0.0
    %789 = vmatprep.subr.mxu0 0.0
    %790 = vmatpush2.msra.mxu0 0.0
    %791 = vmatprep.subr.mxu0 0.0
    %792 = vmatpush2.msra.mxu0 0.0
    %793 = vmatprep.subr.mxu0 0.0
    %794 = vmatpush2.msra.mxu0 0.0
    %795 = vmatprep.subr.mxu0 0.0
    %796 = vmatpush2.msra.mxu0 0.0
    %797 = vmatprep.subr.mxu0 0.0
    %798 = vmatpush2.msra.mxu0 0.0
    %799 = vmatprep.subr.mxu0 0.0
    %800 = vmatpush2.msra.mxu0 0.0
    %801 = vmatprep.subr.mxu0 0.0
    %802 = vmatpush2.msra.mxu0 0.0
    %803 = vmatprep.subr.mxu0 0.0
    %804 = vmatpush2.msra.mxu0 0.0
    %805 = vmatprep.subr.mxu0 0.0
    %806 = vmatpush2.msra.mxu0 0.0
    %807 = vmatprep.subr.mxu0 0.0
    %808 = vmatpush2.msra.mxu0 0.0
    %809 = vmatprep.mubr.f32.mxu0 0.0
    %810 = vmatmul.mubr.f32.gmra.mxu0 %v743
    %v811 = vpop.f32.mrf.mxu0
    %v812 = vadd.f32 %v347, %v811
    %v813 = vpop.f32.mrf.mxu0
    %814 = vdwg.mxu0
    %v816 = vrot.slane %v812, 6
    %v818 = vsel %vm246, %v735, %v816
    %v819 = vxor.u32 %v818, 2147483648
    %v820 = vmul.f32 %v819, 1.442695
    %v821 = vpow.pop %v820
    %v822 = vadd.f32 %v821, 1.0
    %v823 = vrcp.pop %v822
    %v824 = vmul.f32 1.0, %v823
    %v825 = vtanh.pop %v818
    %v826 = vmul.f32 %v824, %v640
    %828 = vrot.lane.b32.xlu0 %v825, 32
    %v829 = vpop.permute.xlu0 %828
    %v831 = vmul.f32 %v824, %v829
    %833 = vrot.lane.b32.xlu0 %v831, 32
    %v834 = vpop.permute.xlu0 %833
    %v836 = vadd.f32 %v826, %v834
    %v837 = vtanh.pop %v836
    %839 = vrot.lane.b32.xlu0 %v837, 32
    %v840 = vpop.permute.xlu0 %839
    %v842 = vmul.f32 %v824, %v840
    %s843 = sld [smem:[#allocation3 + $0x4]]
    %s844 = scalar_lea.vmem [#allocation8], %s843
    %v845 = vld [vmem:[%s844] sm:$0x1]
    %s846 = sld [smem:[#allocation3 + $0x84]]
    %s847 = scalar_lea.vmem [#allocation8], %s846
    %v848 = vld [vmem:[%s847] sm:$0x1]
    %v850 = vlaneseq
    %v851 = vshrl.u32 %v850, 7
    %v852 = vsub.s32 0, %v851
    %v853 = vrot.slane %v848, %v852
    %v855 = vsel %vm136, %v845, %v853
    %857 = vrot.lane.b32.xlu0 %v842, 64
    %v858 = vpop.permute.xlu0 %857
    %v859 = vsel %vm138, %v858, 0
    %861 = vmatprep.subr.mxu0 0.0
    %862 = vmatpush1.msra.mxu0 0.0
    %863 = vmatprep.subr.mxu0 0.0
    %864 = vmatpush1.msra.mxu0 0.0
    %865 = vmatprep.subr.mxu0 0.0
    %866 = vmatpush1.msra.mxu0 0.0
    %867 = vmatprep.subr.mxu0 0.0
    %868 = vmatpush1.msra.mxu0 0.0
    %869 = vmatprep.subr.mxu0 0.0
    %870 = vmatpush1.msra.mxu0 0.0
    %871 = vmatprep.subr.mxu0 0.0
    %872 = vmatpush1.msra.mxu0 0.0
    %873 = vmatprep.subr.mxu0 0.0
    %874 = vmatpush1.msra.mxu0 0.0
    %875 = vmatprep.subr.mxu0 0.0
    %876 = vmatpush1.msra.mxu0 0.0
    %877 = vmatprep.subr.mxu0 0.0
    %878 = vmatpush1.msra.mxu0 0.0
    %879 = vmatprep.subr.mxu0 0.0
    %880 = vmatpush1.msra.mxu0 0.0
    %881 = vmatprep.subr.mxu0 0.0
    %882 = vmatpush1.msra.mxu0 0.0
    %883 = vmatprep.subr.mxu0 0.0
    %884 = vmatpush1.msra.mxu0 0.0
    %885 = vmatprep.subr.mxu0 0.0
    %886 = vmatpush1.msra.mxu0 %v108
    %887 = vmatprep.subr.mxu0 0.0
    %888 = vmatpush1.msra.mxu0 %v107
    %889 = vmatprep.subr.mxu0 0.0
    %890 = vmatpush1.msra.mxu0 %v106
    %891 = vmatprep.subr.mxu0 0.0
    %892 = vmatpush1.msra.mxu0 %v105
    %893 = vmatprep.subr.mxu0 0.0
    %894 = vmatpush2.msra.mxu0 0.0
    %895 = vmatprep.subr.mxu0 0.0
    %896 = vmatpush2.msra.mxu0 0.0
    %897 = vmatprep.subr.mxu0 0.0
    %898 = vmatpush2.msra.mxu0 0.0
    %899 = vmatprep.subr.mxu0 0.0
    %900 = vmatpush2.msra.mxu0 0.0
    %901 = vmatprep.subr.mxu0 0.0
    %902 = vmatpush2.msra.mxu0 0.0
    %903 = vmatprep.subr.mxu0 0.0
    %904 = vmatpush2.msra.mxu0 0.0
    %905 = vmatprep.subr.mxu0 0.0
    %906 = vmatpush2.msra.mxu0 0.0
    %907 = vmatprep.subr.mxu0 0.0
    %908 = vmatpush2.msra.mxu0 0.0
    %909 = vmatprep.subr.mxu0 0.0
    %910 = vmatpush2.msra.mxu0 0.0
    %911 = vmatprep.subr.mxu0 0.0
    %912 = vmatpush2.msra.mxu0 0.0
    %913 = vmatprep.subr.mxu0 0.0
    %914 = vmatpush2.msra.mxu0 0.0
    %915 = vmatprep.subr.mxu0 0.0
    %916 = vmatpush2.msra.mxu0 0.0
    %917 = vmatprep.subr.mxu0 0.0
    %918 = vmatpush2.msra.mxu0 0.0
    %919 = vmatprep.subr.mxu0 0.0
    %920 = vmatpush2.msra.mxu0 0.0
    %921 = vmatprep.subr.mxu0 0.0
    %922 = vmatpush2.msra.mxu0 0.0
    %923 = vmatprep.subr.mxu0 0.0
    %924 = vmatpush2.msra.mxu0 0.0
    %925 = vmatprep.mubr.f32.mxu0 0.0
    %926 = vmatmul.mubr.f32.gmra.mxu0 %v859
    %v927 = vpop.f32.mrf.mxu0
    %v928 = vadd.f32 0.0, %v927
    %v929 = vpop.f32.mrf.mxu0
    %930 = vdwg.mxu0
    %v931 = vadd.f32 %v855, %v928
    %v933 = vrot.slane %v842, 2
    %934 = vrot.lane.b32.xlu0 %v933, 96
    %v935 = vpop.permute.xlu0 %934
    %v937 = vsel %vm138, %v858, %v935
    %v939 = vsel %vm349, %v937, 0
    %941 = vmatprep.subr.mxu0 0.0
    %942 = vmatpush1.msra.mxu0 0.0
    %943 = vmatprep.subr.mxu0 0.0
    %944 = vmatpush1.msra.mxu0 0.0
    %945 = vmatprep.subr.mxu0 0.0
    %946 = vmatpush1.msra.mxu0 0.0
    %947 = vmatprep.subr.mxu0 0.0
    %948 = vmatpush1.msra.mxu0 0.0
    %949 = vmatprep.subr.mxu0 0.0
    %950 = vmatpush1.msra.mxu0 0.0
    %951 = vmatprep.subr.mxu0 0.0
    %952 = vmatpush1.msra.mxu0 0.0
    %953 = vmatprep.subr.mxu0 0.0
    %954 = vmatpush1.msra.mxu0 0.0
    %955 = vmatprep.subr.mxu0 0.0
    %956 = vmatpush1.msra.mxu0 0.0
    %957 = vmatprep.subr.mxu0 0.0
    %958 = vmatpush1.msra.mxu0 %v116
    %959 = vmatprep.subr.mxu0 0.0
    %960 = vmatpush1.msra.mxu0 %v115
    %961 = vmatprep.subr.mxu0 0.0
    %962 = vmatpush1.msra.mxu0 %v114
    %963 = vmatprep.subr.mxu0 0.0
    %964 = vmatpush1.msra.mxu0 %v113
    %965 = vmatprep.subr.mxu0 0.0
    %966 = vmatpush1.msra.mxu0 %v112
    %967 = vmatprep.subr.mxu0 0.0
    %968 = vmatpush1.msra.mxu0 %v111
    %969 = vmatprep.subr.mxu0 0.0
    %970 = vmatpush1.msra.mxu0 %v110
    %971 = vmatprep.subr.mxu0 0.0
    %972 = vmatpush1.msra.mxu0 %v109
    %973 = vmatprep.subr.mxu0 0.0
    %974 = vmatpush2.msra.mxu0 0.0
    %975 = vmatprep.subr.mxu0 0.0
    %976 = vmatpush2.msra.mxu0 0.0
    %977 = vmatprep.subr.mxu0 0.0
    %978 = vmatpush2.msra.mxu0 0.0
    %979 = vmatprep.subr.mxu0 0.0
    %980 = vmatpush2.msra.mxu0 0.0
    %981 = vmatprep.subr.mxu0 0.0
    %982 = vmatpush2.msra.mxu0 0.0
    %983 = vmatprep.subr.mxu0 0.0
    %984 = vmatpush2.msra.mxu0 0.0
    %985 = vmatprep.subr.mxu0 0.0
    %986 = vmatpush2.msra.mxu0 0.0
    %987 = vmatprep.subr.mxu0 0.0
    %988 = vmatpush2.msra.mxu0 0.0
    %989 = vmatprep.subr.mxu0 0.0
    %990 = vmatpush2.msra.mxu0 0.0
    %991 = vmatprep.subr.mxu0 0.0
    %992 = vmatpush2.msra.mxu0 0.0
    %993 = vmatprep.subr.mxu0 0.0
    %994 = vmatpush2.msra.mxu0 0.0
    %995 = vmatprep.subr.mxu0 0.0
    %996 = vmatpush2.msra.mxu0 0.0
    %997 = vmatprep.subr.mxu0 0.0
    %998 = vmatpush2.msra.mxu0 0.0
    %999 = vmatprep.subr.mxu0 0.0
    %1000 = vmatpush2.msra.mxu0 0.0
    %1001 = vmatprep.subr.mxu0 0.0
    %1002 = vmatpush2.msra.mxu0 0.0
    %1003 = vmatprep.subr.mxu0 0.0
    %1004 = vmatpush2.msra.mxu0 0.0
    %1005 = vmatprep.mubr.f32.mxu0 0.0
    %1006 = vmatmul.mubr.f32.gmra.mxu0 %v939
    %v1007 = vpop.f32.mrf.mxu0
    %v1008 = vadd.f32 %v347, %v1007
    %v1009 = vpop.f32.mrf.mxu0
    %1010 = vdwg.mxu0
    %v1012 = vrot.slane %v1008, 6
    %v1014 = vsel %vm246, %v931, %v1012
    %v1015 = vxor.u32 %v1014, 2147483648
    %v1016 = vmul.f32 %v1015, 1.442695
    %v1017 = vpow.pop %v1016
    %v1018 = vadd.f32 %v1017, 1.0
    %v1019 = vrcp.pop %v1018
    %v1020 = vmul.f32 1.0, %v1019
    %v1021 = vtanh.pop %v1014
    %v1022 = vmul.f32 %v1020, %v836
    %1024 = vrot.lane.b32.xlu0 %v1021, 32
    %v1025 = vpop.permute.xlu0 %1024
    %v1027 = vmul.f32 %v1020, %v1025
    %1029 = vrot.lane.b32.xlu0 %v1027, 32
    %v1030 = vpop.permute.xlu0 %1029
    %v1032 = vadd.f32 %v1022, %v1030
    %v1033 = vtanh.pop %v1032
    %1035 = vrot.lane.b32.xlu0 %v1033, 32
    %v1036 = vpop.permute.xlu0 %1035
    %v1038 = vmul.f32 %v1020, %v1036
    %s1039 = sld [smem:[#allocation3 + $0x5]]
    %s1040 = scalar_lea.vmem [#allocation8], %s1039
    %v1041 = vld [vmem:[%s1040] sm:$0x1]
    %s1042 = sld [smem:[#allocation3 + $0x85]]
    %s1043 = scalar_lea.vmem [#allocation8], %s1042
    %v1044 = vld [vmem:[%s1043] sm:$0x1]
    %v1046 = vlaneseq
    %v1047 = vshrl.u32 %v1046, 7
    %v1048 = vsub.s32 0, %v1047
    %v1049 = vrot.slane %v1044, %v1048
    %v1051 = vsel %vm136, %v1041, %v1049
    %1053 = vrot.lane.b32.xlu0 %v1038, 64
    %v1054 = vpop.permute.xlu0 %1053
    %v1055 = vsel %vm138, %v1054, 0
    %1057 = vmatprep.subr.mxu0 0.0
    %1058 = vmatpush1.msra.mxu0 0.0
    %1059 = vmatprep.subr.mxu0 0.0
    %1060 = vmatpush1.msra.mxu0 0.0
    %1061 = vmatprep.subr.mxu0 0.0
    %1062 = vmatpush1.msra.mxu0 0.0
    %1063 = vmatprep.subr.mxu0 0.0
    %1064 = vmatpush1.msra.mxu0 0.0
    %1065 = vmatprep.subr.mxu0 0.0
    %1066 = vmatpush1.msra.mxu0 0.0
    %1067 = vmatprep.subr.mxu0 0.0
    %1068 = vmatpush1.msra.mxu0 0.0
    %1069 = vmatprep.subr.mxu0 0.0
    %1070 = vmatpush1.msra.mxu0 0.0
    %1071 = vmatprep.subr.mxu0 0.0
    %1072 = vmatpush1.msra.mxu0 0.0
    %1073 = vmatprep.subr.mxu0 0.0
    %1074 = vmatpush1.msra.mxu0 0.0
    %1075 = vmatprep.subr.mxu0 0.0
    %1076 = vmatpush1.msra.mxu0 0.0
    %1077 = vmatprep.subr.mxu0 0.0
    %1078 = vmatpush1.msra.mxu0 0.0
    %1079 = vmatprep.subr.mxu0 0.0
    %1080 = vmatpush1.msra.mxu0 0.0
    %1081 = vmatprep.subr.mxu0 0.0
    %1082 = vmatpush1.msra.mxu0 %v108
    %1083 = vmatprep.subr.mxu0 0.0
    %1084 = vmatpush1.msra.mxu0 %v107
    %1085 = vmatprep.subr.mxu0 0.0
    %1086 = vmatpush1.msra.mxu0 %v106
    %1087 = vmatprep.subr.mxu0 0.0
    %1088 = vmatpush1.msra.mxu0 %v105
    %1089 = vmatprep.subr.mxu0 0.0
    %1090 = vmatpush2.msra.mxu0 0.0
    %1091 = vmatprep.subr.mxu0 0.0
    %1092 = vmatpush2.msra.mxu0 0.0
    %1093 = vmatprep.subr.mxu0 0.0
    %1094 = vmatpush2.msra.mxu0 0.0
    %1095 = vmatprep.subr.mxu0 0.0
    %1096 = vmatpush2.msra.mxu0 0.0
    %1097 = vmatprep.subr.mxu0 0.0
    %1098 = vmatpush2.msra.mxu0 0.0
    %1099 = vmatprep.subr.mxu0 0.0
    %1100 = vmatpush2.msra.mxu0 0.0
    %1101 = vmatprep.subr.mxu0 0.0
    %1102 = vmatpush2.msra.mxu0 0.0
    %1103 = vmatprep.subr.mxu0 0.0
    %1104 = vmatpush2.msra.mxu0 0.0
    %1105 = vmatprep.subr.mxu0 0.0
    %1106 = vmatpush2.msra.mxu0 0.0
    %1107 = vmatprep.subr.mxu0 0.0
    %1108 = vmatpush2.msra.mxu0 0.0
    %1109 = vmatprep.subr.mxu0 0.0
    %1110 = vmatpush2.msra.mxu0 0.0
    %1111 = vmatprep.subr.mxu0 0.0
    %1112 = vmatpush2.msra.mxu0 0.0
    %1113 = vmatprep.subr.mxu0 0.0
    %1114 = vmatpush2.msra.mxu0 0.0
    %1115 = vmatprep.subr.mxu0 0.0
    %1116 = vmatpush2.msra.mxu0 0.0
    %1117 = vmatprep.subr.mxu0 0.0
    %1118 = vmatpush2.msra.mxu0 0.0
    %1119 = vmatprep.subr.mxu0 0.0
    %1120 = vmatpush2.msra.mxu0 0.0
    %1121 = vmatprep.mubr.f32.mxu0 0.0
    %1122 = vmatmul.mubr.f32.gmra.mxu0 %v1055
    %v1123 = vpop.f32.mrf.mxu0
    %v1124 = vadd.f32 0.0, %v1123
    %v1125 = vpop.f32.mrf.mxu0
    %1126 = vdwg.mxu0
    %v1127 = vadd.f32 %v1051, %v1124
    %v1129 = vrot.slane %v1038, 2
    %1130 = vrot.lane.b32.xlu0 %v1129, 96
    %v1131 = vpop.permute.xlu0 %1130
    %v1133 = vsel %vm138, %v1054, %v1131
    %v1135 = vsel %vm349, %v1133, 0
    %1137 = vmatprep.subr.mxu0 0.0
    %1138 = vmatpush1.msra.mxu0 0.0
    %1139 = vmatprep.subr.mxu0 0.0
    %1140 = vmatpush1.msra.mxu0 0.0
    %1141 = vmatprep.subr.mxu0 0.0
    %1142 = vmatpush1.msra.mxu0 0.0
    %1143 = vmatprep.subr.mxu0 0.0
    %1144 = vmatpush1.msra.mxu0 0.0
    %1145 = vmatprep.subr.mxu0 0.0
    %1146 = vmatpush1.msra.mxu0 0.0
    %1147 = vmatprep.subr.mxu0 0.0
    %1148 = vmatpush1.msra.mxu0 0.0
    %1149 = vmatprep.subr.mxu0 0.0
    %1150 = vmatpush1.msra.mxu0 0.0
    %1151 = vmatprep.subr.mxu0 0.0
    %1152 = vmatpush1.msra.mxu0 0.0
    %1153 = vmatprep.subr.mxu0 0.0
    %1154 = vmatpush1.msra.mxu0 %v116
    %1155 = vmatprep.subr.mxu0 0.0
    %1156 = vmatpush1.msra.mxu0 %v115
    %1157 = vmatprep.subr.mxu0 0.0
    %1158 = vmatpush1.msra.mxu0 %v114
    %1159 = vmatprep.subr.mxu0 0.0
    %1160 = vmatpush1.msra.mxu0 %v113
    %1161 = vmatprep.subr.mxu0 0.0
    %1162 = vmatpush1.msra.mxu0 %v112
    %1163 = vmatprep.subr.mxu0 0.0
    %1164 = vmatpush1.msra.mxu0 %v111
    %1165 = vmatprep.subr.mxu0 0.0
    %1166 = vmatpush1.msra.mxu0 %v110
    %1167 = vmatprep.subr.mxu0 0.0
    %1168 = vmatpush1.msra.mxu0 %v109
    %1169 = vmatprep.subr.mxu0 0.0
    %1170 = vmatpush2.msra.mxu0 0.0
    %1171 = vmatprep.subr.mxu0 0.0
    %1172 = vmatpush2.msra.mxu0 0.0
    %1173 = vmatprep.subr.mxu0 0.0
    %1174 = vmatpush2.msra.mxu0 0.0
    %1175 = vmatprep.subr.mxu0 0.0
    %1176 = vmatpush2.msra.mxu0 0.0
    %1177 = vmatprep.subr.mxu0 0.0
    %1178 = vmatpush2.msra.mxu0 0.0
    %1179 = vmatprep.subr.mxu0 0.0
    %1180 = vmatpush2.msra.mxu0 0.0
    %1181 = vmatprep.subr.mxu0 0.0
    %1182 = vmatpush2.msra.mxu0 0.0
    %1183 = vmatprep.subr.mxu0 0.0
    %1184 = vmatpush2.msra.mxu0 0.0
    %1185 = vmatprep.subr.mxu0 0.0
    %1186 = vmatpush2.msra.mxu0 0.0
    %1187 = vmatprep.subr.mxu0 0.0
    %1188 = vmatpush2.msra.mxu0 0.0
    %1189 = vmatprep.subr.mxu0 0.0
    %1190 = vmatpush2.msra.mxu0 0.0
    %1191 = vmatprep.subr.mxu0 0.0
    %1192 = vmatpush2.msra.mxu0 0.0
    %1193 = vmatprep.subr.mxu0 0.0
    %1194 = vmatpush2.msra.mxu0 0.0
    %1195 = vmatprep.subr.mxu0 0.0
    %1196 = vmatpush2.msra.mxu0 0.0
    %1197 = vmatprep.subr.mxu0 0.0
    %1198 = vmatpush2.msra.mxu0 0.0
    %1199 = vmatprep.subr.mxu0 0.0
    %1200 = vmatpush2.msra.mxu0 0.0
    %1201 = vmatprep.mubr.f32.mxu0 0.0
    %1202 = vmatmul.mubr.f32.gmra.mxu0 %v1135
    %v1203 = vpop.f32.mrf.mxu0
    %v1204 = vadd.f32 %v347, %v1203
    %v1205 = vpop.f32.mrf.mxu0
    %1206 = vdwg.mxu0
    %v1208 = vrot.slane %v1204, 6
    %v1210 = vsel %vm246, %v1127, %v1208
    %v1211 = vxor.u32 %v1210, 2147483648
    %v1212 = vmul.f32 %v1211, 1.442695
    %v1213 = vpow.pop %v1212
    %v1214 = vadd.f32 %v1213, 1.0
    %v1215 = vrcp.pop %v1214
    %v1216 = vmul.f32 1.0, %v1215
    %v1217 = vtanh.pop %v1210
    %v1218 = vmul.f32 %v1216, %v1032
    %1220 = vrot.lane.b32.xlu0 %v1217, 32
    %v1221 = vpop.permute.xlu0 %1220
    %v1223 = vmul.f32 %v1216, %v1221
    %1225 = vrot.lane.b32.xlu0 %v1223, 32
    %v1226 = vpop.permute.xlu0 %1225
    %v1228 = vadd.f32 %v1218, %v1226
    %v1229 = vtanh.pop %v1228
    %1231 = vrot.lane.b32.xlu0 %v1229, 32
    %v1232 = vpop.permute.xlu0 %1231
    %v1234 = vmul.f32 %v1216, %v1232
    %s1235 = sld [smem:[#allocation3 + $0x6]]
    %s1236 = scalar_lea.vmem [#allocation8], %s1235
    %v1237 = vld [vmem:[%s1236] sm:$0x1]
    %s1238 = sld [smem:[#allocation3 + $0x86]]
    %s1239 = scalar_lea.vmem [#allocation8], %s1238
    %v1240 = vld [vmem:[%s1239] sm:$0x1]
    %v1242 = vlaneseq
    %v1243 = vshrl.u32 %v1242, 7
    %v1244 = vsub.s32 0, %v1243
    %v1245 = vrot.slane %v1240, %v1244
    %v1247 = vsel %vm136, %v1237, %v1245
    %1249 = vrot.lane.b32.xlu0 %v1234, 64
    %v1250 = vpop.permute.xlu0 %1249
    %v1251 = vsel %vm138, %v1250, 0
    %1253 = vmatprep.subr.mxu0 0.0
    %1254 = vmatpush1.msra.mxu0 0.0
    %1255 = vmatprep.subr.mxu0 0.0
    %1256 = vmatpush1.msra.mxu0 0.0
    %1257 = vmatprep.subr.mxu0 0.0
    %1258 = vmatpush1.msra.mxu0 0.0
    %1259 = vmatprep.subr.mxu0 0.0
    %1260 = vmatpush1.msra.mxu0 0.0
    %1261 = vmatprep.subr.mxu0 0.0
    %1262 = vmatpush1.msra.mxu0 0.0
    %1263 = vmatprep.subr.mxu0 0.0
    %1264 = vmatpush1.msra.mxu0 0.0
    %1265 = vmatprep.subr.mxu0 0.0
    %1266 = vmatpush1.msra.mxu0 0.0
    %1267 = vmatprep.subr.mxu0 0.0
    %1268 = vmatpush1.msra.mxu0 0.0
    %1269 = vmatprep.subr.mxu0 0.0
    %1270 = vmatpush1.msra.mxu0 0.0
    %1271 = vmatprep.subr.mxu0 0.0
    %1272 = vmatpush1.msra.mxu0 0.0
    %1273 = vmatprep.subr.mxu0 0.0
    %1274 = vmatpush1.msra.mxu0 0.0
    %1275 = vmatprep.subr.mxu0 0.0
    %1276 = vmatpush1.msra.mxu0 0.0
    %1277 = vmatprep.subr.mxu0 0.0
    %1278 = vmatpush1.msra.mxu0 %v108
    %1279 = vmatprep.subr.mxu0 0.0
    %1280 = vmatpush1.msra.mxu0 %v107
    %1281 = vmatprep.subr.mxu0 0.0
    %1282 = vmatpush1.msra.mxu0 %v106
    %1283 = vmatprep.subr.mxu0 0.0
    %1284 = vmatpush1.msra.mxu0 %v105
    %1285 = vmatprep.subr.mxu0 0.0
    %1286 = vmatpush2.msra.mxu0 0.0
    %1287 = vmatprep.subr.mxu0 0.0
    %1288 = vmatpush2.msra.mxu0 0.0
    %1289 = vmatprep.subr.mxu0 0.0
    %1290 = vmatpush2.msra.mxu0 0.0
    %1291 = vmatprep.subr.mxu0 0.0
    %1292 = vmatpush2.msra.mxu0 0.0
    %1293 = vmatprep.subr.mxu0 0.0
    %1294 = vmatpush2.msra.mxu0 0.0
    %1295 = vmatprep.subr.mxu0 0.0
    %1296 = vmatpush2.msra.mxu0 0.0
    %1297 = vmatprep.subr.mxu0 0.0
    %1298 = vmatpush2.msra.mxu0 0.0
    %1299 = vmatprep.subr.mxu0 0.0
    %1300 = vmatpush2.msra.mxu0 0.0
    %1301 = vmatprep.subr.mxu0 0.0
    %1302 = vmatpush2.msra.mxu0 0.0
    %1303 = vmatprep.subr.mxu0 0.0
    %1304 = vmatpush2.msra.mxu0 0.0
    %1305 = vmatprep.subr.mxu0 0.0
    %1306 = vmatpush2.msra.mxu0 0.0
    %1307 = vmatprep.subr.mxu0 0.0
    %1308 = vmatpush2.msra.mxu0 0.0
    %1309 = vmatprep.subr.mxu0 0.0
    %1310 = vmatpush2.msra.mxu0 0.0
    %1311 = vmatprep.subr.mxu0 0.0
    %1312 = vmatpush2.msra.mxu0 0.0
    %1313 = vmatprep.subr.mxu0 0.0
    %1314 = vmatpush2.msra.mxu0 0.0
    %1315 = vmatprep.subr.mxu0 0.0
    %1316 = vmatpush2.msra.mxu0 0.0
    %1317 = vmatprep.mubr.f32.mxu0 0.0
    %1318 = vmatmul.mubr.f32.gmra.mxu0 %v1251
    %v1319 = vpop.f32.mrf.mxu0
    %v1320 = vadd.f32 0.0, %v1319
    %v1321 = vpop.f32.mrf.mxu0
    %1322 = vdwg.mxu0
    %v1323 = vadd.f32 %v1247, %v1320
    %v1325 = vrot.slane %v1234, 2
    %1326 = vrot.lane.b32.xlu0 %v1325, 96
    %v1327 = vpop.permute.xlu0 %1326
    %v1329 = vsel %vm138, %v1250, %v1327
    %v1331 = vsel %vm349, %v1329, 0
    %1333 = vmatprep.subr.mxu0 0.0
    %1334 = vmatpush1.msra.mxu0 0.0
    %1335 = vmatprep.subr.mxu0 0.0
    %1336 = vmatpush1.msra.mxu0 0.0
    %1337 = vmatprep.subr.mxu0 0.0
    %1338 = vmatpush1.msra.mxu0 0.0
    %1339 = vmatprep.subr.mxu0 0.0
    %1340 = vmatpush1.msra.mxu0 0.0
    %1341 = vmatprep.subr.mxu0 0.0
    %1342 = vmatpush1.msra.mxu0 0.0
    %1343 = vmatprep.subr.mxu0 0.0
    %1344 = vmatpush1.msra.mxu0 0.0
    %1345 = vmatprep.subr.mxu0 0.0
    %1346 = vmatpush1.msra.mxu0 0.0
    %1347 = vmatprep.subr.mxu0 0.0
    %1348 = vmatpush1.msra.mxu0 0.0
    %1349 = vmatprep.subr.mxu0 0.0
    %1350 = vmatpush1.msra.mxu0 %v116
    %1351 = vmatprep.subr.mxu0 0.0
    %1352 = vmatpush1.msra.mxu0 %v115
    %1353 = vmatprep.subr.mxu0 0.0
    %1354 = vmatpush1.msra.mxu0 %v114
    %1355 = vmatprep.subr.mxu0 0.0
    %1356 = vmatpush1.msra.mxu0 %v113
    %1357 = vmatprep.subr.mxu0 0.0
    %1358 = vmatpush1.msra.mxu0 %v112
    %1359 = vmatprep.subr.mxu0 0.0
    %1360 = vmatpush1.msra.mxu0 %v111
    %1361 = vmatprep.subr.mxu0 0.0
    %1362 = vmatpush1.msra.mxu0 %v110
    %1363 = vmatprep.subr.mxu0 0.0
    %1364 = vmatpush1.msra.mxu0 %v109
    %1365 = vmatprep.subr.mxu0 0.0
    %1366 = vmatpush2.msra.mxu0 0.0
    %1367 = vmatprep.subr.mxu0 0.0
    %1368 = vmatpush2.msra.mxu0 0.0
    %1369 = vmatprep.subr.mxu0 0.0
    %1370 = vmatpush2.msra.mxu0 0.0
    %1371 = vmatprep.subr.mxu0 0.0
    %1372 = vmatpush2.msra.mxu0 0.0
    %1373 = vmatprep.subr.mxu0 0.0
    %1374 = vmatpush2.msra.mxu0 0.0
    %1375 = vmatprep.subr.mxu0 0.0
    %1376 = vmatpush2.msra.mxu0 0.0
    %1377 = vmatprep.subr.mxu0 0.0
    %1378 = vmatpush2.msra.mxu0 0.0
    %1379 = vmatprep.subr.mxu0 0.0
    %1380 = vmatpush2.msra.mxu0 0.0
    %1381 = vmatprep.subr.mxu0 0.0
    %1382 = vmatpush2.msra.mxu0 0.0
    %1383 = vmatprep.subr.mxu0 0.0
    %1384 = vmatpush2.msra.mxu0 0.0
    %1385 = vmatprep.subr.mxu0 0.0
    %1386 = vmatpush2.msra.mxu0 0.0
    %1387 = vmatprep.subr.mxu0 0.0
    %1388 = vmatpush2.msra.mxu0 0.0
    %1389 = vmatprep.subr.mxu0 0.0
    %1390 = vmatpush2.msra.mxu0 0.0
    %1391 = vmatprep.subr.mxu0 0.0
    %1392 = vmatpush2.msra.mxu0 0.0
    %1393 = vmatprep.subr.mxu0 0.0
    %1394 = vmatpush2.msra.mxu0 0.0
    %1395 = vmatprep.subr.mxu0 0.0
    %1396 = vmatpush2.msra.mxu0 0.0
    %1397 = vmatprep.mubr.f32.mxu0 0.0
    %1398 = vmatmul.mubr.f32.gmra.mxu0 %v1331
    %v1399 = vpop.f32.mrf.mxu0
    %v1400 = vadd.f32 %v347, %v1399
    %v1401 = vpop.f32.mrf.mxu0
    %1402 = vdwg.mxu0
    %v1404 = vrot.slane %v1400, 6
    %v1406 = vsel %vm246, %v1323, %v1404
    %v1407 = vxor.u32 %v1406, 2147483648
    %v1408 = vmul.f32 %v1407, 1.442695
    %v1409 = vpow.pop %v1408
    %v1410 = vadd.f32 %v1409, 1.0
    %v1411 = vrcp.pop %v1410
    %v1412 = vmul.f32 1.0, %v1411
    %v1413 = vtanh.pop %v1406
    %v1414 = vmul.f32 %v1412, %v1228
    %1416 = vrot.lane.b32.xlu0 %v1413, 32
    %v1417 = vpop.permute.xlu0 %1416
    %v1419 = vmul.f32 %v1412, %v1417
    %1421 = vrot.lane.b32.xlu0 %v1419, 32
    %v1422 = vpop.permute.xlu0 %1421
    %v1424 = vadd.f32 %v1414, %v1422
    %v1425 = vtanh.pop %v1424
    %1427 = vrot.lane.b32.xlu0 %v1425, 32
    %v1428 = vpop.permute.xlu0 %1427
    %v1430 = vmul.f32 %v1412, %v1428
    %s1431 = sld [smem:[#allocation3 + $0x7]]
    %s1432 = scalar_lea.vmem [#allocation8], %s1431
    %v1433 = vld [vmem:[%s1432] sm:$0x1]
    %s1434 = sld [smem:[#allocation3 + $0x87]]
    %s1435 = scalar_lea.vmem [#allocation8], %s1434
    %v1436 = vld [vmem:[%s1435] sm:$0x1]
    %v1438 = vlaneseq
    %v1439 = vshrl.u32 %v1438, 7
    %v1440 = vsub.s32 0, %v1439
    %v1441 = vrot.slane %v1436, %v1440
    %v1443 = vsel %vm136, %v1433, %v1441
    %1445 = vrot.lane.b32.xlu0 %v1430, 64
    %v1446 = vpop.permute.xlu0 %1445
    %v1447 = vsel %vm138, %v1446, 0
    %1449 = vmatprep.subr.mxu0 0.0
    %1450 = vmatpush1.msra.mxu0 0.0
    %1451 = vmatprep.subr.mxu0 0.0
    %1452 = vmatpush1.msra.mxu0 0.0
    %1453 = vmatprep.subr.mxu0 0.0
    %1454 = vmatpush1.msra.mxu0 0.0
    %1455 = vmatprep.subr.mxu0 0.0
    %1456 = vmatpush1.msra.mxu0 0.0
    %1457 = vmatprep.subr.mxu0 0.0
    %1458 = vmatpush1.msra.mxu0 0.0
    %1459 = vmatprep.subr.mxu0 0.0
    %1460 = vmatpush1.msra.mxu0 0.0
    %1461 = vmatprep.subr.mxu0 0.0
    %1462 = vmatpush1.msra.mxu0 0.0
    %1463 = vmatprep.subr.mxu0 0.0
    %1464 = vmatpush1.msra.mxu0 0.0
    %1465 = vmatprep.subr.mxu0 0.0
    %1466 = vmatpush1.msra.mxu0 0.0
    %1467 = vmatprep.subr.mxu0 0.0
    %1468 = vmatpush1.msra.mxu0 0.0
    %1469 = vmatprep.subr.mxu0 0.0
    %1470 = vmatpush1.msra.mxu0 0.0
    %1471 = vmatprep.subr.mxu0 0.0
    %1472 = vmatpush1.msra.mxu0 0.0
    %1473 = vmatprep.subr.mxu0 0.0
    %1474 = vmatpush1.msra.mxu0 %v108
    %1475 = vmatprep.subr.mxu0 0.0
    %1476 = vmatpush1.msra.mxu0 %v107
    %1477 = vmatprep.subr.mxu0 0.0
    %1478 = vmatpush1.msra.mxu0 %v106
    %1479 = vmatprep.subr.mxu0 0.0
    %1480 = vmatpush1.msra.mxu0 %v105
    %1481 = vmatprep.subr.mxu0 0.0
    %1482 = vmatpush2.msra.mxu0 0.0
    %1483 = vmatprep.subr.mxu0 0.0
    %1484 = vmatpush2.msra.mxu0 0.0
    %1485 = vmatprep.subr.mxu0 0.0
    %1486 = vmatpush2.msra.mxu0 0.0
    %1487 = vmatprep.subr.mxu0 0.0
    %1488 = vmatpush2.msra.mxu0 0.0
    %1489 = vmatprep.subr.mxu0 0.0
    %1490 = vmatpush2.msra.mxu0 0.0
    %1491 = vmatprep.subr.mxu0 0.0
    %1492 = vmatpush2.msra.mxu0 0.0
    %1493 = vmatprep.subr.mxu0 0.0
    %1494 = vmatpush2.msra.mxu0 0.0
    %1495 = vmatprep.subr.mxu0 0.0
    %1496 = vmatpush2.msra.mxu0 0.0
    %1497 = vmatprep.subr.mxu0 0.0
    %1498 = vmatpush2.msra.mxu0 0.0
    %1499 = vmatprep.subr.mxu0 0.0
    %1500 = vmatpush2.msra.mxu0 0.0
    %1501 = vmatprep.subr.mxu0 0.0
    %1502 = vmatpush2.msra.mxu0 0.0
    %1503 = vmatprep.subr.mxu0 0.0
    %1504 = vmatpush2.msra.mxu0 0.0
    %1505 = vmatprep.subr.mxu0 0.0
    %1506 = vmatpush2.msra.mxu0 0.0
    %1507 = vmatprep.subr.mxu0 0.0
    %1508 = vmatpush2.msra.mxu0 0.0
    %1509 = vmatprep.subr.mxu0 0.0
    %1510 = vmatpush2.msra.mxu0 0.0
    %1511 = vmatprep.subr.mxu0 0.0
    %1512 = vmatpush2.msra.mxu0 0.0
    %1513 = vmatprep.mubr.f32.mxu0 0.0
    %1514 = vmatmul.mubr.f32.gmra.mxu0 %v1447
    %v1515 = vpop.f32.mrf.mxu0
    %v1516 = vadd.f32 0.0, %v1515
    %v1517 = vpop.f32.mrf.mxu0
    %1518 = vdwg.mxu0
    %v1519 = vadd.f32 %v1443, %v1516
    %v1521 = vrot.slane %v1430, 2
    %1522 = vrot.lane.b32.xlu0 %v1521, 96
    %v1523 = vpop.permute.xlu0 %1522
    %v1525 = vsel %vm138, %v1446, %v1523
    %v1527 = vsel %vm349, %v1525, 0
    %1529 = vmatprep.subr.mxu0 0.0
    %1530 = vmatpush1.msra.mxu0 0.0
    %1531 = vmatprep.subr.mxu0 0.0
    %1532 = vmatpush1.msra.mxu0 0.0
    %1533 = vmatprep.subr.mxu0 0.0
    %1534 = vmatpush1.msra.mxu0 0.0
    %1535 = vmatprep.subr.mxu0 0.0
    %1536 = vmatpush1.msra.mxu0 0.0
    %1537 = vmatprep.subr.mxu0 0.0
    %1538 = vmatpush1.msra.mxu0 0.0
    %1539 = vmatprep.subr.mxu0 0.0
    %1540 = vmatpush1.msra.mxu0 0.0
    %1541 = vmatprep.subr.mxu0 0.0
    %1542 = vmatpush1.msra.mxu0 0.0
    %1543 = vmatprep.subr.mxu0 0.0
    %1544 = vmatpush1.msra.mxu0 0.0
    %1545 = vmatprep.subr.mxu0 0.0
    %1546 = vmatpush1.msra.mxu0 %v116
    %1547 = vmatprep.subr.mxu0 0.0
    %1548 = vmatpush1.msra.mxu0 %v115
    %1549 = vmatprep.subr.mxu0 0.0
    %1550 = vmatpush1.msra.mxu0 %v114
    %1551 = vmatprep.subr.mxu0 0.0
    %1552 = vmatpush1.msra.mxu0 %v113
    %1553 = vmatprep.subr.mxu0 0.0
    %1554 = vmatpush1.msra.mxu0 %v112
    %1555 = vmatprep.subr.mxu0 0.0
    %1556 = vmatpush1.msra.mxu0 %v111
    %1557 = vmatprep.subr.mxu0 0.0
    %1558 = vmatpush1.msra.mxu0 %v110
    %1559 = vmatprep.subr.mxu0 0.0
    %1560 = vmatpush1.msra.mxu0 %v109
    %1561 = vmatprep.subr.mxu0 0.0
    %1562 = vmatpush2.msra.mxu0 0.0
    %1563 = vmatprep.subr.mxu0 0.0
    %1564 = vmatpush2.msra.mxu0 0.0
    %1565 = vmatprep.subr.mxu0 0.0
    %1566 = vmatpush2.msra.mxu0 0.0
    %1567 = vmatprep.subr.mxu0 0.0
    %1568 = vmatpush2.msra.mxu0 0.0
    %1569 = vmatprep.subr.mxu0 0.0
    %1570 = vmatpush2.msra.mxu0 0.0
    %1571 = vmatprep.subr.mxu0 0.0
    %1572 = vmatpush2.msra.mxu0 0.0
    %1573 = vmatprep.subr.mxu0 0.0
    %1574 = vmatpush2.msra.mxu0 0.0
    %1575 = vmatprep.subr.mxu0 0.0
    %1576 = vmatpush2.msra.mxu0 0.0
    %1577 = vmatprep.subr.mxu0 0.0
    %1578 = vmatpush2.msra.mxu0 0.0
    %1579 = vmatprep.subr.mxu0 0.0
    %1580 = vmatpush2.msra.mxu0 0.0
    %1581 = vmatprep.subr.mxu0 0.0
    %1582 = vmatpush2.msra.mxu0 0.0
    %1583 = vmatprep.subr.mxu0 0.0
    %1584 = vmatpush2.msra.mxu0 0.0
    %1585 = vmatprep.subr.mxu0 0.0
    %1586 = vmatpush2.msra.mxu0 0.0
    %1587 = vmatprep.subr.mxu0 0.0
    %1588 = vmatpush2.msra.mxu0 0.0
    %1589 = vmatprep.subr.mxu0 0.0
    %1590 = vmatpush2.msra.mxu0 0.0
    %1591 = vmatprep.subr.mxu0 0.0
    %1592 = vmatpush2.msra.mxu0 0.0
    %1593 = vmatprep.mubr.f32.mxu0 0.0
    %1594 = vmatmul.mubr.f32.gmra.mxu0 %v1527
    %v1595 = vpop.f32.mrf.mxu0
    %v1596 = vadd.f32 %v347, %v1595
    %v1597 = vpop.f32.mrf.mxu0
    %1598 = vdwg.mxu0
    %v1600 = vrot.slane %v1596, 6
    %v1602 = vsel %vm246, %v1519, %v1600
    %v1603 = vxor.u32 %v1602, 2147483648
    %v1604 = vmul.f32 %v1603, 1.442695
    %v1605 = vpow.pop %v1604
    %v1606 = vadd.f32 %v1605, 1.0
    %v1607 = vrcp.pop %v1606
    %v1608 = vmul.f32 1.0, %v1607
    %v1609 = vtanh.pop %v1602
    %v1610 = vmul.f32 %v1608, %v1424
    %1612 = vrot.lane.b32.xlu0 %v1609, 32
    %v1613 = vpop.permute.xlu0 %1612
    %v1615 = vmul.f32 %v1608, %v1613
    %1617 = vrot.lane.b32.xlu0 %v1615, 32
    %v1618 = vpop.permute.xlu0 %1617
    %v1620 = vadd.f32 %v1610, %v1618
    %v1621 = vtanh.pop %v1620
    %1623 = vrot.lane.b32.xlu0 %v1621, 32
    %v1624 = vpop.permute.xlu0 %1623
    %v1626 = vmul.f32 %v1608, %v1624
    %1628 = vrot.lane.b32.xlu0 %v1626, 64
    %v1629 = vpop.permute.xlu0 %1628
    %v1631 = vrot.slane %v1626, 2
    %1632 = vrot.lane.b32.xlu0 %v1631, 96
    %v1633 = vpop.permute.xlu0 %1632
    %v1635 = vsel %vm138, %v1629, %v1633
    %v1637 = vsel %vm349, %v1635, 0
    %1639 = vmatprep.subr.mxu0 0.0
    %1640 = vmatpush1.msra.mxu0 0.0
    %1641 = vmatprep.subr.mxu0 0.0
    %1642 = vmatpush1.msra.mxu0 0.0
    %1643 = vmatprep.subr.mxu0 0.0
    %1644 = vmatpush1.msra.mxu0 0.0
    %1645 = vmatprep.subr.mxu0 0.0
    %1646 = vmatpush1.msra.mxu0 0.0
    %1647 = vmatprep.subr.mxu0 0.0
    %1648 = vmatpush1.msra.mxu0 0.0
    %1649 = vmatprep.subr.mxu0 0.0
    %1650 = vmatpush1.msra.mxu0 0.0
    %1651 = vmatprep.subr.mxu0 0.0
    %1652 = vmatpush1.msra.mxu0 0.0
    %1653 = vmatprep.subr.mxu0 0.0
    %1654 = vmatpush1.msra.mxu0 0.0
    %1655 = vmatprep.subr.mxu0 0.0
    %1656 = vmatpush1.msra.mxu0 %v116
    %1657 = vmatprep.subr.mxu0 0.0
    %1658 = vmatpush1.msra.mxu0 %v115
    %1659 = vmatprep.subr.mxu0 0.0
    %1660 = vmatpush1.msra.mxu0 %v114
    %1661 = vmatprep.subr.mxu0 0.0
    %1662 = vmatpush1.msra.mxu0 %v113
    %1663 = vmatprep.subr.mxu0 0.0
    %1664 = vmatpush1.msra.mxu0 %v112
    %1665 = vmatprep.subr.mxu0 0.0
    %1666 = vmatpush1.msra.mxu0 %v111
    %1667 = vmatprep.subr.mxu0 0.0
    %1668 = vmatpush1.msra.mxu0 %v110
    %1669 = vmatprep.subr.mxu0 0.0
    %1670 = vmatpush1.msra.mxu0 %v109
    %1671 = vmatprep.subr.mxu0 0.0
    %1672 = vmatpush2.msra.mxu0 0.0
    %1673 = vmatprep.subr.mxu0 0.0
    %1674 = vmatpush2.msra.mxu0 0.0
    %1675 = vmatprep.subr.mxu0 0.0
    %1676 = vmatpush2.msra.mxu0 0.0
    %1677 = vmatprep.subr.mxu0 0.0
    %1678 = vmatpush2.msra.mxu0 0.0
    %1679 = vmatprep.subr.mxu0 0.0
    %1680 = vmatpush2.msra.mxu0 0.0
    %1681 = vmatprep.subr.mxu0 0.0
    %1682 = vmatpush2.msra.mxu0 0.0
    %1683 = vmatprep.subr.mxu0 0.0
    %1684 = vmatpush2.msra.mxu0 0.0
    %1685 = vmatprep.subr.mxu0 0.0
    %1686 = vmatpush2.msra.mxu0 0.0
    %1687 = vmatprep.subr.mxu0 0.0
    %1688 = vmatpush2.msra.mxu0 0.0
    %1689 = vmatprep.subr.mxu0 0.0
    %1690 = vmatpush2.msra.mxu0 0.0
    %1691 = vmatprep.subr.mxu0 0.0
    %1692 = vmatpush2.msra.mxu0 0.0
    %1693 = vmatprep.subr.mxu0 0.0
    %1694 = vmatpush2.msra.mxu0 0.0
    %1695 = vmatprep.subr.mxu0 0.0
    %1696 = vmatpush2.msra.mxu0 0.0
    %1697 = vmatprep.subr.mxu0 0.0
    %1698 = vmatpush2.msra.mxu0 0.0
    %1699 = vmatprep.subr.mxu0 0.0
    %1700 = vmatpush2.msra.mxu0 0.0
    %1701 = vmatprep.subr.mxu0 0.0
    %1702 = vmatpush2.msra.mxu0 0.0
    %1703 = vmatprep.mubr.f32.mxu0 0.0
    %1704 = vmatmul.mubr.f32.gmra.mxu0 %v1637
    %v1705 = vpop.f32.mrf.mxu0
    %v1706 = vadd.f32 %v347, %v1705
    %v1707 = vpop.f32.mrf.mxu0
    %1708 = vdwg.mxu0
    %v1709 = vxor.u32 %v1706, 2147483648
    %v1710 = vmul.f32 %v1709, 1.442695
    %v1711 = vpow.pop %v1710
    %v1712 = vadd.f32 %v1711, 1.0
    %v1713 = vrcp.pop %v1712
    %v1714 = vmul.f32 1.0, %v1713
    %v1715 = vtanh.pop %v1706
    %v1717 = vrot.slane %v1620, 2
    %v1719 = vmul.f32 %v1714, %v1717
    %1721 = vrot.lane.b32.xlu0 %v1715, 32
    %v1722 = vpop.permute.xlu0 %1721
    %v1724 = vmul.f32 %v1714, %v1722
    %1726 = vrot.lane.b32.xlu0 %v1724, 32
    %v1727 = vpop.permute.xlu0 %1726
    %v1729 = vadd.f32 %v1719, %v1727
    %v1730 = vtanh.pop %v1729
    %1732 = vrot.lane.b32.xlu0 %v1730, 32
    %v1733 = vpop.permute.xlu0 %1732
    %v1735 = vmul.f32 %v1714, %v1733
    %vm1736 = vcmask 254976
    %1737 = vst.msk [vmem:[#allocation13] sm:$0x3] %vm1736, %v1629
    %1739 = vrot.lane.b32.xlu0 %v1735, 64
    %v1740 = vpop.permute.xlu0 %1739
    %s1742 = scalar_lea.vmem [#allocation13], 2
    %1743 = vst.msk [vmem:[%s1742] sm:$0x3] %vm1736, %v1740
    %1744 = vrot.lane.b32.xlu0 %v1620, 96
    %v1745 = vpop.permute.xlu0 %1744
    %1747 = vst.msk [vmem:[#allocation14] sm:$0x3] %vm1736, %v1745
    %1749 = vrot.lane.b32.xlu0 %v1729, 96
    %v1750 = vpop.permute.xlu0 %1749
    %s1752 = scalar_lea.vmem [#allocation14], 2
    %1753 = vst.msk [vmem:[%s1752] sm:$0x3] %vm1736, %v1750
    %v1754 = vld [vmem:[%s7] sm:$0x1]
    %v1756 = vlaneseq
    %v1757 = vshrl.u32 %v1756, 7
    %v1758 = vsub.s32 0, %v1757
    %v1759 = vrot.slane %v1754, %v1758
    %1760 = vrot.lane.b32.xlu0 %v1759, 64
    %v1761 = vpop.permute.xlu0 %1760
    %v1763 = vmul.f32 %v1735, %v1761
    %1765 = vrot.lane.b32.xlu0 %v1763, 64
    %v1766 = vpop.permute.xlu0 %1765
    %v1768 = vsel %vm1736, %v1766, 0.0
    %1769 = vadd.xlane.f32.xlu0 %v1768
    %v1770 = vpop.xlane.xlu0 %1769
    %v1771 = vld [vmem:[#allocation2] sm:$0x1]
    %v1773 = vlaneseq
    %v1774 = vshrl.u32 %v1773, 7
    %v1775 = vsub.s32 0, %v1774
    %v1776 = vrot.slane %v1771, %v1775
    %v1778 = vadd.f32 %v1770, %v1776
    %v1779 = vxor.u32 %v1778, 2147483648
    %v1780 = vmul.f32 %v1779, 1.442695
    %v1781 = vpow.pop %v1780
    %v1782 = vadd.f32 %v1781, 1.0
    %v1783 = vrcp.pop %v1782
    %v1784 = vmul.f32 1.0, %v1783
    %vm1785 = vcmask 1024
    %1786 = vst.msk [vmem:[%s9] sm:$0x3] %vm1785, %v1784
    // Predicated region
    $region58: #{sentiment_forward.1} parent=1 // pred_check
      _
    $region59: #{sentiment_forward.1} parent=1 // pred_check_branch
      %1788 = sbr.rel (0) target = $region61
    $region60: #{sentiment_forward.1} parent=1 // pred_region
      _
    $region61: #{sentiment_forward.1} parent=1 // pred_fallthru
      _
    // Predicated region
    $region62: #{sentiment_forward.1} parent=1 // pred_check
      _
    $region63: #{sentiment_forward.1} parent=1 // pred_check_branch
      %1790 = sbr.rel (0) target = $region65
    $region64: #{sentiment_forward.1} parent=1 // pred_region
      %s1792 = ssub.s32 64, 64
      %1793 = vsyncadd [#allocation5], %s1792
      %s1794 = sshll.u32 [#allocation13], 4
      %s1795 = int_to_ptr.vmem [resolvable:$true] %s1794
      %1800 = dma.vmem_to_hbm [thread:$0]  %s1795, 64, %s10, [#allocation5], 32, 32, 2
    $region65: #{sentiment_forward.1} parent=1 // pred_fallthru
      _
    // Predicated region
    $region66: #{sentiment_forward.1} parent=1 // pred_check
      _
    $region67: #{sentiment_forward.1} parent=1 // pred_check_branch
      %1802 = sbr.rel (0) target = $region69
    $region68: #{sentiment_forward.1} parent=1 // pred_region
      %s1804 = ssub.s32 64, 64
      %1805 = vsyncadd [#allocation15], %s1804
      %s1806 = sshll.u32 [#allocation14], 4
      %s1807 = int_to_ptr.vmem [resolvable:$true] %s1806
      %1812 = dma.vmem_to_hbm [thread:$0]  %s1807, 64, %s11, [#allocation15], 32, 32, 2
    $region69: #{sentiment_forward.1} parent=1 // pred_fallthru
      _
    // Predicated region
    $region70: #{sentiment_forward.1} parent=1 // pred_check
      _
    $region71: #{sentiment_forward.1} parent=1 // pred_check_branch
      %1814 = sbr.rel (0) target = $region73
    $region72: #{sentiment_forward.1} parent=1 // pred_region
      _
    $region73: #{sentiment_forward.1} parent=1 // pred_fallthru
      _
    // Predicated region
    $region74: #{sentiment_forward.1} parent=1 // pred_check
      _
    $region75: #{sentiment_forward.1} parent=1 // pred_check_branch
      %1816 = sbr.rel (0) target = $region77
    $region76: #{sentiment_forward.1} parent=1 // pred_region
      %1817 = dma.done [#allocation5], 64
    $region77: #{sentiment_forward.1} parent=1 // pred_fallthru
      _
    // Predicated region
    $region78: #{sentiment_forward.1} parent=1 // pred_check
      _
    $region79: #{sentiment_forward.1} parent=1 // pred_check_branch
      %1819 = sbr.rel (0) target = $region81
    $region80: #{sentiment_forward.1} parent=1 // pred_region
      %1820 = dma.done [#allocation15], 64
    $region81: #{sentiment_forward.1} parent=1 // pred_fallthru
      _
    %1821 = vsyncpa [#allocation4], 1
    %1822 = vsyncpa [#allocation9], 1
    %1823 = vsyncpa [#allocation12], 1
    %1824 = vsyncpa [#allocation5], 1
    %1825 = vsyncpa [#allocation15], 1
    %1826 = vsyncpa [#allocation6], 1

</llo_original>
